<compile_context>
chip_gen: v7x
topology: tpu7x:2x2x1
jax: 0.10.0
libtpu: 0.0.40
codegen_flags: <defaults>
</compile_context>

<pallas_src>
import jax
import jax.numpy as jnp
from jax.experimental import pallas as pl
from jax.experimental.pallas import tpu as pltpu


def _cross_attn_kernel(x_cat_ref, ctxt_big_ref, ctx_bighm_ref,
                       wq2_ref, wk2_ref, wv2_ref, wp2_ref,
                       hmt_ref, hm_ref, seg_ref,
                       wvec_ref, cb_ref, bp_ref,
                       o_ref):
    f32 = jnp.float32
    bf = jnp.bfloat16
    n_q, _ = x_cat_ref.shape             # (N, B*C)
    n_lanes = seg_ref.shape[0]           # B*H*M

    # --- projections (bf16 MXU operands, f32 accumulation) -------------------
    # q   [n, b*C+c]          = scale * (x[b,n,:] @ Wq^T)[c]
    # kt  [b*C+c, b*HM+h*M+m] = k[b,m,c]   (batch-block-diagonal, no transpose)
    # v   [b*HM+h*M+m, b*C+c] = v[b,m,c]   (batch-block-diagonal)
    q = jnp.dot(x_cat_ref[...], wq2_ref[...], preferred_element_type=f32)
    kt = jnp.dot(wk2_ref[...], ctxt_big_ref[...], preferred_element_type=f32)
    v = jnp.dot(ctx_bighm_ref[...], wv2_ref[...], preferred_element_type=f32)
    k_blkt = kt.astype(bf) * hmt_ref[...]     # (B*C, L) head-block-diagonal K^T
    v_blk = v.astype(bf) * hm_ref[...]        # (L, B*C) head-block-diagonal V

    # --- attention logits for every (batch, head) in one lane-dense matmul ---
    logits = jnp.dot(q.astype(bf), k_blkt, preferred_element_type=f32)    # (N, L)

    # --- per-(batch, head) softmax --------------------------------------------
    # TODO(synk): row-global max (over all batches/heads) is exact for softmax
    # but can underflow if per-head logit ranges differ by >~80; switch to a
    # per-segment max if that ever matters.
    p = jnp.exp(logits - jnp.max(logits, axis=-1, keepdims=True))
    denom = jnp.dot(p.astype(bf), seg_ref[...], preferred_element_type=f32)
    attn = p * pl.reciprocal(denom, approx=True)                          # (N, L)

    # --- depthwise 3x3 conv (padding=1, cross-correlation), fused over heads --
    # Row taps: sublane roll + first/last-row zero masks.  Column taps: lane
    # roll; the m==0 / m==M-1 segment-boundary zeros are folded into the
    # per-lane weight vectors (wvec).  9 VPU FMAs total, no MXU work.
    row = jax.lax.broadcasted_iota(jnp.int32, (n_q, n_lanes), 0)
    not_first_row = (row > 0).astype(f32)
    not_last_row = (row < n_q - 1).astype(f32)
    a_top = pltpu.roll(attn, 1, axis=0) * not_first_row        # attn[n-1, :]
    a_bot = pltpu.roll(attn, n_q - 1, axis=0) * not_last_row   # attn[n+1, :]
    conv = None
    for i, tap in enumerate((a_top, attn, a_bot)):             # kernel rows 0,1,2
        t_left = pltpu.roll(tap, 1, axis=1)                    # column m-1
        t_right = pltpu.roll(tap, n_lanes - 1, axis=1)         # column m+1
        part = (wvec_ref[3 * i + 0:3 * i + 1, :] * t_left
                + wvec_ref[3 * i + 1:3 * i + 2, :] * tap
                + wvec_ref[3 * i + 2:3 * i + 3, :] * t_right)
        conv = part if conv is None else conv + part
    conv = conv + cb_ref[...]

    # --- block-diagonal PV matmul and output projection ------------------------
    heads = jnp.dot(conv.astype(bf), v_blk, preferred_element_type=f32)   # (N, B*C)
    o_ref[...] = (jnp.dot(heads.astype(bf), wp2_ref[...],
                          preferred_element_type=f32) + bp_ref[...])


def _block_diag(blocks):
    rows = sum(b.shape[0] for b in blocks)
    cols = sum(b.shape[1] for b in blocks)
    out = jnp.zeros((rows, cols), blocks[0].dtype)
    r = c = 0
    for blk in blocks:
        out = out.at[r:r + blk.shape[0], c:c + blk.shape[1]].set(blk)
        r += blk.shape[0]
        c += blk.shape[1]
    return out


def cross_attention_pro(x, context, params, num_heads):
    B, N, C = x.shape
    M = context.shape[1]
    H = num_heads
    D = C // H
    HM = H * M
    L = B * HM
    BC = B * C
    scale = D ** -0.5
    f32 = jnp.float32
    bf = jnp.bfloat16

    wq_t = params["wq_t"].astype(f32)            # (C, C)  = Wq^T
    wkv_t = params["wkv_t"].astype(f32)          # (C, 2C) = Wkv^T
    wp_t = params["wp_t"].astype(f32)            # (C, C)
    bp = params["bp"].astype(f32)                # (C,)
    conv_w = params["conv_w"][:, 0].astype(f32)  # (H, 3, 3)
    conv_b = params["conv_b"].astype(f32)        # (H,)

    wk = wkv_t[:, :C].T                          # (C, C) PyTorch layout: k^T = Wk @ ctx^T
    wv_t = wkv_t[:, C:]                          # (C, C)

    # ---------------- weight-derived constants (batch-block-diagonal) --------
    wq2 = _block_diag([wq_t * scale] * B).astype(bf)    # softmax scale folded in
    wk2 = _block_diag([wk] * B).astype(bf)
    wv2 = _block_diag([wv_t] * B).astype(bf)
    wp2 = _block_diag([wp_t] * B).astype(bf)
    bp_cat = jnp.tile(bp, (B,)).reshape(1, BC)           # (1, BC)

    # 0/1 head masks: channel (b,c) <-> lane (b,h,m) selects head(c) == h.
    head_of_c = jnp.tile(jnp.arange(C) // D, (B,))               # (BC,)
    head_of_lane = jnp.tile(jnp.repeat(jnp.arange(H), M), (B,))  # (L,)
    hmt = (head_of_c[:, None] == head_of_lane[None, :]).astype(bf)   # (BC, L)
    hm = hmt.T                                                        # (L, BC)

    # Block-ones matrix for per-(batch, head) softmax denominators.
    seg = jnp.kron(jnp.eye(B * H, dtype=f32), jnp.ones((M, M), f32)).astype(bf)

    # Per-lane 3x3 conv weights with the column-boundary zeros folded in.
    m_idx = jnp.arange(M)
    col_masks = [(m_idx > 0).astype(f32), jnp.ones((M,), f32),
                 (m_idx < M - 1).astype(f32)]
    wvec = jnp.stack([
        jnp.tile(jnp.repeat(conv_w[:, i, j], M), (B,))
        * jnp.tile(col_masks[j], (B * H,))
        for i in range(3) for j in range(3)
    ])                                                          # (9, L) f32
    cb = jnp.tile(jnp.repeat(conv_b, M), (B,)).reshape(1, L)    # (1, L) f32

    # ---------------- data-derived operands (host-side layout plumbing) ------
    x_cat = jnp.transpose(x, (1, 0, 2)).reshape(N, BC).astype(bf)         # (N, BC)
    ctxt = jnp.transpose(context, (0, 2, 1))                              # (B, C, M)
    ctxt_big = _block_diag(
        [jnp.tile(ctxt[b], (1, H)) for b in range(B)]).astype(bf)         # (BC, L)
    ctx_bighm = _block_diag(
        [jnp.tile(context[b], (H, 1)) for b in range(B)]).astype(bf)      # (L, BC)

    out_cat = pl.pallas_call(
        _cross_attn_kernel,
        out_shape=jax.ShapeDtypeStruct((N, BC), jnp.float32),
        grid=(1,),
        in_specs=[
            pl.BlockSpec((N, BC), lambda i: (0, 0)),    # x (batch channel-stacked)
            pl.BlockSpec((BC, L), lambda i: (0, 0)),    # ctx^T, head-tiled, batch-blk-diag
            pl.BlockSpec((L, BC), lambda i: (0, 0)),    # ctx, head-tiled rows, batch-blk-diag
            pl.BlockSpec((BC, BC), lambda i: (0, 0)),   # Wq (scaled)
            pl.BlockSpec((BC, BC), lambda i: (0, 0)),   # Wk
            pl.BlockSpec((BC, BC), lambda i: (0, 0)),   # Wv
            pl.BlockSpec((BC, BC), lambda i: (0, 0)),   # Wproj
            pl.BlockSpec((BC, L), lambda i: (0, 0)),    # head mask (K^T side)
            pl.BlockSpec((L, BC), lambda i: (0, 0)),    # head mask (V side)
            pl.BlockSpec((L, L), lambda i: (0, 0)),     # segment ones
            pl.BlockSpec((9, L), lambda i: (0, 0)),     # per-lane conv weights
            pl.BlockSpec((1, L), lambda i: (0, 0)),     # per-lane conv bias
            pl.BlockSpec((1, BC), lambda i: (0, 0)),    # proj bias
        ],
        out_specs=pl.BlockSpec((N, BC), lambda i: (0, 0)),
        compiler_params=pltpu.CompilerParams(dimension_semantics=("arbitrary",)),
    )(x_cat, ctxt_big, ctx_bighm, wq2, wk2, wv2, wp2, hmt, hm, seg, wvec, cb, bp_cat)

    # out_cat[n, b*C + c]  ->  (B, N, C)
    return out_cat.reshape(N, B, C).transpose(1, 0, 2)


def reference(x, context, params, num_heads):
    """Pure-JAX replica of the PyTorch forward (for verification)."""
    B, N, C = x.shape
    M = context.shape[1]
    H = num_heads
    D = C // H
    hp = jax.lax.Precision.HIGHEST
    q = jnp.matmul(x, params["wq_t"], precision=hp).reshape(B, N, H, D)
    q = q.transpose(0, 2, 1, 3)                                     # (B,H,N,D)
    kv = jnp.matmul(context, params["wkv_t"], precision=hp)
    kv = kv.reshape(B, M, 2, H, D).transpose(2, 0, 3, 1, 4)         # (2,B,H,M,D)
    k, v = kv[0], kv[1]
    attn = jnp.einsum("bhnd,bhmd->bhnm", q, k, precision=hp) * (D ** -0.5)
    attn = jax.nn.softmax(attn, axis=-1)
    attn = jax.lax.conv_general_dilated(
        attn, params["conv_w"], window_strides=(1, 1), padding="SAME",
        dimension_numbers=("NCHW", "OIHW", "NCHW"),
        feature_group_count=H, precision=hp)
    attn = attn + params["conv_b"][None, :, None, None]
    out = jnp.einsum("bhnm,bhmd->bhnd", attn, v, precision=hp)
    out = out.transpose(0, 2, 1, 3).reshape(B, N, C)
    return jnp.matmul(out, params["wp_t"], precision=hp) + params["bp"]


if __name__ == "__main__":
    B, N, M, C, H = 2, 16, 16, 32, 8     # dim=32, num_heads=8 -> head_dim=4

    key = jax.random.PRNGKey(0)
    ks = jax.random.split(key, 8)
    # PyTorch parameter layouts; Linear weights are (out, in), so pass W^T.
    wq = jax.random.normal(ks[0], (C, C), jnp.float32) * 0.05
    wkv = jax.random.normal(ks[1], (2 * C, C), jnp.float32) * 0.05
    wp = jax.random.normal(ks[2], (C, C), jnp.float32) * 0.05
    bp = jax.random.normal(ks[3], (C,), jnp.float32) * 0.05
    conv_w = jax.random.normal(ks[4], (H, 1, 3, 3), jnp.float32) * 0.1
    conv_b = jax.random.normal(ks[5], (H,), jnp.float32) * 0.1

    x = jax.random.normal(ks[6], (B, N, C), jnp.float32)
    context = jax.random.normal(ks[7], (B, M, C), jnp.float32)

    params = {
        "wq_t": wq.T, "wkv_t": wkv.T, "wp_t": wp.T, "bp": bp,
        "conv_w": conv_w, "conv_b": conv_b,
    }

    out = jax.block_until_ready(cross_attention_pro(x, context, params, num_heads=H))
    ref = jax.block_until_ready(reference(x, context, params, num_heads=H))
    err = float(jnp.max(jnp.abs(out - ref)))
    assert out.shape == (B, N, C), out.shape
    assert err < 5e-3, f"max abs error {err}"

    print("KERNEL_OK")
</pallas_src>

<mosaic_0001>
module attributes {stable_mosaic.version = 11 : i64} {
  func.func @_cross_attn_kernel(%arg0: i32, %arg1: memref<16x64xbf16, #tpu.memory_space<vmem>>, %arg2: memref<64x256xbf16, #tpu.memory_space<vmem>>, %arg3: memref<256x64xbf16, #tpu.memory_space<vmem>>, %arg4: memref<64x64xbf16, #tpu.memory_space<vmem>>, %arg5: memref<64x64xbf16, #tpu.memory_space<vmem>>, %arg6: memref<64x64xbf16, #tpu.memory_space<vmem>>, %arg7: memref<64x64xbf16, #tpu.memory_space<vmem>>, %arg8: memref<64x256xbf16, #tpu.memory_space<vmem>>, %arg9: memref<256x64xbf16, #tpu.memory_space<vmem>>, %arg10: memref<256x256xbf16, #tpu.memory_space<vmem>>, %arg11: memref<9x256xf32, #tpu.memory_space<vmem>>, %arg12: memref<1x256xf32, #tpu.memory_space<vmem>>, %arg13: memref<1x64xf32, #tpu.memory_space<vmem>>, %arg14: memref<16x64xf32, #tpu.memory_space<vmem>>) attributes {dimension_semantics = [#tpu.dimension_semantics<arbitrary>], iteration_bounds = array<i64: 1>, scalar_prefetch = 0 : i64, scratch_operands = 0 : i64, tpu.core_type = #tpu.core_type<tc>, window_params = [{pipeline_mode = #tpu.pipeline_mode<synchronous>, transform_indices = @transform_0, window_bounds = array<i64: 16, 64>}, {pipeline_mode = #tpu.pipeline_mode<synchronous>, transform_indices = @transform_1, window_bounds = array<i64: 64, 256>}, {pipeline_mode = #tpu.pipeline_mode<synchronous>, transform_indices = @transform_2, window_bounds = array<i64: 256, 64>}, {pipeline_mode = #tpu.pipeline_mode<synchronous>, transform_indices = @transform_3, window_bounds = array<i64: 64, 64>}, {pipeline_mode = #tpu.pipeline_mode<synchronous>, transform_indices = @transform_4, window_bounds = array<i64: 64, 64>}, {pipeline_mode = #tpu.pipeline_mode<synchronous>, transform_indices = @transform_5, window_bounds = array<i64: 64, 64>}, {pipeline_mode = #tpu.pipeline_mode<synchronous>, transform_indices = @transform_6, window_bounds = array<i64: 64, 64>}, {pipeline_mode = #tpu.pipeline_mode<synchronous>, transform_indices = @transform_7, window_bounds = array<i64: 64, 256>}, {pipeline_mode = #tpu.pipeline_mode<synchronous>, transform_indices = @transform_8, window_bounds = array<i64: 256, 64>}, {pipeline_mode = #tpu.pipeline_mode<synchronous>, transform_indices = @transform_9, window_bounds = array<i64: 256, 256>}, {pipeline_mode = #tpu.pipeline_mode<synchronous>, transform_indices = @transform_10, window_bounds = array<i64: 9, 256>}, {pipeline_mode = #tpu.pipeline_mode<synchronous>, transform_indices = @transform_11, window_bounds = array<i64: 1, 256>}, {pipeline_mode = #tpu.pipeline_mode<synchronous>, transform_indices = @transform_12, window_bounds = array<i64: 1, 64>}, {pipeline_mode = #tpu.pipeline_mode<synchronous>, transform_indices = @transform_13, window_bounds = array<i64: 16, 64>}]} {
    %c0 = arith.constant 0 : index
    %c0_0 = arith.constant 0 : index
    %0 = vector.load %arg1[%c0, %c0_0] : memref<16x64xbf16, #tpu.memory_space<vmem>>, vector<16x64xbf16>
    %c0_1 = arith.constant 0 : index
    %c0_2 = arith.constant 0 : index
    %1 = vector.load %arg4[%c0_1, %c0_2] : memref<64x64xbf16, #tpu.memory_space<vmem>>, vector<64x64xbf16>
    %cst = arith.constant dense<0.000000e+00> : vector<16x64xf32>
    %2 = tpu.matmul %0, %1, %cst {dimension_numbers = #tpu.dot_dimension_numbers<[1], [0], [0], [1], [0, 0, 1, 1], [], []>} : vector<16x64xbf16>, vector<64x64xbf16>, vector<16x64xf32> -> vector<16x64xf32>
    %c0_3 = arith.constant 0 : index
    %c0_4 = arith.constant 0 : index
    %3 = vector.load %arg5[%c0_3, %c0_4] : memref<64x64xbf16, #tpu.memory_space<vmem>>, vector<64x64xbf16>
    %c0_5 = arith.constant 0 : index
    %c0_6 = arith.constant 0 : index
    %4 = vector.load %arg2[%c0_5, %c0_6] : memref<64x256xbf16, #tpu.memory_space<vmem>>, vector<64x256xbf16>
    %cst_7 = arith.constant dense<0.000000e+00> : vector<64x256xf32>
    %5 = tpu.matmul %3, %4, %cst_7 {dimension_numbers = #tpu.dot_dimension_numbers<[1], [0], [0], [1], [0, 0, 1, 1], [], []>} : vector<64x64xbf16>, vector<64x256xbf16>, vector<64x256xf32> -> vector<64x256xf32>
    %c0_8 = arith.constant 0 : index
    %c0_9 = arith.constant 0 : index
    %6 = vector.load %arg3[%c0_8, %c0_9] : memref<256x64xbf16, #tpu.memory_space<vmem>>, vector<256x64xbf16>
    %c0_10 = arith.constant 0 : index
    %c0_11 = arith.constant 0 : index
    %7 = vector.load %arg6[%c0_10, %c0_11] : memref<64x64xbf16, #tpu.memory_space<vmem>>, vector<64x64xbf16>
    %cst_12 = arith.constant dense<0.000000e+00> : vector<256x64xf32>
    %8 = tpu.matmul %6, %7, %cst_12 {dimension_numbers = #tpu.dot_dimension_numbers<[1], [0], [0], [1], [0, 0, 1, 1], [], []>} : vector<256x64xbf16>, vector<64x64xbf16>, vector<256x64xf32> -> vector<256x64xf32>
    %9 = arith.truncf %5 : vector<64x256xf32> to vector<64x256xbf16>
    %c0_13 = arith.constant 0 : index
    %c0_14 = arith.constant 0 : index
    %10 = vector.load %arg8[%c0_13, %c0_14] : memref<64x256xbf16, #tpu.memory_space<vmem>>, vector<64x256xbf16>
    %11 = arith.mulf %9, %10 : vector<64x256xbf16>
    %12 = arith.truncf %8 : vector<256x64xf32> to vector<256x64xbf16>
    %c0_15 = arith.constant 0 : index
    %c0_16 = arith.constant 0 : index
    %13 = vector.load %arg9[%c0_15, %c0_16] : memref<256x64xbf16, #tpu.memory_space<vmem>>, vector<256x64xbf16>
    %14 = arith.mulf %12, %13 : vector<256x64xbf16>
    %15 = arith.truncf %2 : vector<16x64xf32> to vector<16x64xbf16>
    %cst_17 = arith.constant dense<0.000000e+00> : vector<16x256xf32>
    %16 = tpu.matmul %15, %11, %cst_17 {dimension_numbers = #tpu.dot_dimension_numbers<[1], [0], [0], [1], [0, 0, 1, 1], [], []>} : vector<16x64xbf16>, vector<64x256xbf16>, vector<16x256xf32> -> vector<16x256xf32>
    %cst_18 = arith.constant dense<0xFF800000> : vector<16xf32>
    %17 = vector.multi_reduction <maximumf>, %16, %cst_18 [1] : vector<16x256xf32> to vector<16xf32>
    %18 = vector.shape_cast %17 : vector<16xf32> to vector<16x1xf32>
    %19 = vector.broadcast %18 : vector<16x1xf32> to vector<16x256xf32>
    %20 = arith.subf %16, %19 : vector<16x256xf32>
    %21 = math.exp %20 : vector<16x256xf32>
    %22 = arith.truncf %21 : vector<16x256xf32> to vector<16x256xbf16>
    %c0_19 = arith.constant 0 : index
    %c0_20 = arith.constant 0 : index
    %23 = vector.load %arg10[%c0_19, %c0_20] : memref<256x256xbf16, #tpu.memory_space<vmem>>, vector<256x256xbf16>
    %cst_21 = arith.constant dense<0.000000e+00> : vector<16x256xf32>
    %24 = tpu.matmul %22, %23, %cst_21 {dimension_numbers = #tpu.dot_dimension_numbers<[1], [0], [0], [1], [0, 0, 1, 1], [], []>} : vector<16x256xbf16>, vector<256x256xbf16>, vector<16x256xf32> -> vector<16x256xf32>
    %25 = tpu.reciprocal %24 {approx = true} : vector<16x256xf32> -> vector<16x256xf32>
    %26 = arith.mulf %21, %25 : vector<16x256xf32>
    %27 = tpu.iota {dimensions = array<i32: 0>} : vector<16x256xi32>
    %c0_i32 = arith.constant 0 : i32
    %28 = vector.broadcast %c0_i32 : i32 to vector<16x256xi32>
    %29 = arith.cmpi sgt, %27, %28 : vector<16x256xi32>
    %30 = arith.extui %29 : vector<16x256xi1> to vector<16x256xi32>
    %31 = arith.sitofp %30 : vector<16x256xi32> to vector<16x256xf32>
    %c15_i32 = arith.constant 15 : i32
    %32 = vector.broadcast %c15_i32 : i32 to vector<16x256xi32>
    %33 = arith.cmpi slt, %27, %32 : vector<16x256xi32>
    %34 = arith.extui %33 : vector<16x256xi1> to vector<16x256xi32>
    %35 = arith.sitofp %34 : vector<16x256xi32> to vector<16x256xf32>
    %c1_i32 = arith.constant 1 : i32
    %36 = tpu.dynamic_rotate %26 by %c1_i32 dim 0 : vector<16x256xf32>, i32 -> vector<16x256xf32>
    %37 = arith.mulf %36, %31 : vector<16x256xf32>
    %c15_i32_22 = arith.constant 15 : i32
    %38 = tpu.dynamic_rotate %26 by %c15_i32_22 dim 0 : vector<16x256xf32>, i32 -> vector<16x256xf32>
    %39 = arith.mulf %38, %35 : vector<16x256xf32>
    %c1_i32_23 = arith.constant 1 : i32
    %40 = tpu.dynamic_rotate %37 by %c1_i32_23 dim 1 : vector<16x256xf32>, i32 -> vector<16x256xf32>
    %c255_i32 = arith.constant 255 : i32
    %41 = tpu.dynamic_rotate %37 by %c255_i32 dim 1 : vector<16x256xf32>, i32 -> vector<16x256xf32>
    %c0_24 = arith.constant 0 : index
    %c0_25 = arith.constant 0 : index
    %42 = vector.load %arg11[%c0_24, %c0_25] : memref<9x256xf32, #tpu.memory_space<vmem>>, vector<1x256xf32>
    %43 = vector.broadcast %42 : vector<1x256xf32> to vector<16x256xf32>
    %44 = arith.mulf %43, %40 : vector<16x256xf32>
    %c1 = arith.constant 1 : index
    %c0_26 = arith.constant 0 : index
    %45 = vector.load %arg11[%c1, %c0_26] : memref<9x256xf32, #tpu.memory_space<vmem>>, vector<1x256xf32>
    %46 = vector.broadcast %45 : vector<1x256xf32> to vector<16x256xf32>
    %47 = arith.mulf %46, %37 : vector<16x256xf32>
    %48 = arith.addf %44, %47 : vector<16x256xf32>
    %c2 = arith.constant 2 : index
    %c0_27 = arith.constant 0 : index
    %49 = vector.load %arg11[%c2, %c0_27] : memref<9x256xf32, #tpu.memory_space<vmem>>, vector<1x256xf32>
    %50 = vector.broadcast %49 : vector<1x256xf32> to vector<16x256xf32>
    %51 = arith.mulf %50, %41 : vector<16x256xf32>
    %52 = arith.addf %48, %51 : vector<16x256xf32>
    %c1_i32_28 = arith.constant 1 : i32
    %53 = tpu.dynamic_rotate %26 by %c1_i32_28 dim 1 : vector<16x256xf32>, i32 -> vector<16x256xf32>
    %c255_i32_29 = arith.constant 255 : i32
    %54 = tpu.dynamic_rotate %26 by %c255_i32_29 dim 1 : vector<16x256xf32>, i32 -> vector<16x256xf32>
    %c3 = arith.constant 3 : index
    %c0_30 = arith.constant 0 : index
    %55 = vector.load %arg11[%c3, %c0_30] : memref<9x256xf32, #tpu.memory_space<vmem>>, vector<1x256xf32>
    %56 = vector.broadcast %55 : vector<1x256xf32> to vector<16x256xf32>
    %57 = arith.mulf %56, %53 : vector<16x256xf32>
    %c4 = arith.constant 4 : index
    %c0_31 = arith.constant 0 : index
    %58 = vector.load %arg11[%c4, %c0_31] : memref<9x256xf32, #tpu.memory_space<vmem>>, vector<1x256xf32>
    %59 = vector.broadcast %58 : vector<1x256xf32> to vector<16x256xf32>
    %60 = arith.mulf %59, %26 : vector<16x256xf32>
    %61 = arith.addf %57, %60 : vector<16x256xf32>
    %c5 = arith.constant 5 : index
    %c0_32 = arith.constant 0 : index
    %62 = vector.load %arg11[%c5, %c0_32] : memref<9x256xf32, #tpu.memory_space<vmem>>, vector<1x256xf32>
    %63 = vector.broadcast %62 : vector<1x256xf32> to vector<16x256xf32>
    %64 = arith.mulf %63, %54 : vector<16x256xf32>
    %65 = arith.addf %61, %64 : vector<16x256xf32>
    %66 = arith.addf %52, %65 : vector<16x256xf32>
    %c1_i32_33 = arith.constant 1 : i32
    %67 = tpu.dynamic_rotate %39 by %c1_i32_33 dim 1 : vector<16x256xf32>, i32 -> vector<16x256xf32>
    %c255_i32_34 = arith.constant 255 : i32
    %68 = tpu.dynamic_rotate %39 by %c255_i32_34 dim 1 : vector<16x256xf32>, i32 -> vector<16x256xf32>
    %c6 = arith.constant 6 : index
    %c0_35 = arith.constant 0 : index
    %69 = vector.load %arg11[%c6, %c0_35] : memref<9x256xf32, #tpu.memory_space<vmem>>, vector<1x256xf32>
    %70 = vector.broadcast %69 : vector<1x256xf32> to vector<16x256xf32>
    %71 = arith.mulf %70, %67 : vector<16x256xf32>
    %c7 = arith.constant 7 : index
    %c0_36 = arith.constant 0 : index
    %72 = vector.load %arg11[%c7, %c0_36] : memref<9x256xf32, #tpu.memory_space<vmem>>, vector<1x256xf32>
    %73 = vector.broadcast %72 : vector<1x256xf32> to vector<16x256xf32>
    %74 = arith.mulf %73, %39 : vector<16x256xf32>
    %75 = arith.addf %71, %74 : vector<16x256xf32>
    %c8 = arith.constant 8 : index
    %c0_37 = arith.constant 0 : index
    %76 = vector.load %arg11[%c8, %c0_37] : memref<9x256xf32, #tpu.memory_space<vmem>>, vector<1x256xf32>
    %77 = vector.broadcast %76 : vector<1x256xf32> to vector<16x256xf32>
    %78 = arith.mulf %77, %68 : vector<16x256xf32>
    %79 = arith.addf %75, %78 : vector<16x256xf32>
    %80 = arith.addf %66, %79 : vector<16x256xf32>
    %c0_38 = arith.constant 0 : index
    %c0_39 = arith.constant 0 : index
    %81 = vector.load %arg12[%c0_38, %c0_39] : memref<1x256xf32, #tpu.memory_space<vmem>>, vector<1x256xf32>
    %82 = vector.broadcast %81 : vector<1x256xf32> to vector<16x256xf32>
    %83 = arith.addf %80, %82 : vector<16x256xf32>
    %84 = arith.truncf %83 : vector<16x256xf32> to vector<16x256xbf16>
    %cst_40 = arith.constant dense<0.000000e+00> : vector<16x64xf32>
    %85 = tpu.matmul %84, %14, %cst_40 {dimension_numbers = #tpu.dot_dimension_numbers<[1], [0], [0], [1], [0, 0, 1, 1], [], []>} : vector<16x256xbf16>, vector<256x64xbf16>, vector<16x64xf32> -> vector<16x64xf32>
    %86 = arith.truncf %85 : vector<16x64xf32> to vector<16x64xbf16>
    %c0_41 = arith.constant 0 : index
    %c0_42 = arith.constant 0 : index
    %87 = vector.load %arg7[%c0_41, %c0_42] : memref<64x64xbf16, #tpu.memory_space<vmem>>, vector<64x64xbf16>
    %cst_43 = arith.constant dense<0.000000e+00> : vector<16x64xf32>
    %88 = tpu.matmul %86, %87, %cst_43 {dimension_numbers = #tpu.dot_dimension_numbers<[1], [0], [0], [1], [0, 0, 1, 1], [], []>} : vector<16x64xbf16>, vector<64x64xbf16>, vector<16x64xf32> -> vector<16x64xf32>
    %c0_44 = arith.constant 0 : index
    %c0_45 = arith.constant 0 : index
    %89 = vector.load %arg13[%c0_44, %c0_45] : memref<1x64xf32, #tpu.memory_space<vmem>>, vector<1x64xf32>
    %90 = vector.broadcast %89 : vector<1x64xf32> to vector<16x64xf32>
    %91 = arith.addf %88, %90 : vector<16x64xf32>
    %c0_46 = arith.constant 0 : index
    %c0_47 = arith.constant 0 : index
    %92 = vector.load %arg14[%c0_46, %c0_47] : memref<16x64xf32, #tpu.memory_space<vmem>>, vector<16x64xf32>
    tpu.vector_store %arg14[%c0_46, %c0_47], %91 {strides = array<i32>} : memref<16x64xf32, #tpu.memory_space<vmem>>, vector<16x64xf32>,
    return
  }
  func.func @transform_0(%arg0: i32) -> (i32, i32) {
    %c0_i32 = arith.constant 0 : i32
    %c0_i32_0 = arith.constant 0 : i32
    %c0_i32_1 = arith.constant 0 : i32
    return %c0_i32, %c0_i32_0 : i32, i32
  }
  func.func @transform_1(%arg0: i32) -> (i32, i32) {
    %c0_i32 = arith.constant 0 : i32
    %c0_i32_0 = arith.constant 0 : i32
    %c0_i32_1 = arith.constant 0 : i32
    return %c0_i32, %c0_i32_0 : i32, i32
  }
  func.func @transform_2(%arg0: i32) -> (i32, i32) {
    %c0_i32 = arith.constant 0 : i32
    %c0_i32_0 = arith.constant 0 : i32
    %c0_i32_1 = arith.constant 0 : i32
    return %c0_i32, %c0_i32_0 : i32, i32
  }
  func.func @transform_3(%arg0: i32) -> (i32, i32) {
    %c0_i32 = arith.constant 0 : i32
    %c0_i32_0 = arith.constant 0 : i32
    %c0_i32_1 = arith.constant 0 : i32
    return %c0_i32, %c0_i32_0 : i32, i32
  }
  func.func @transform_4(%arg0: i32) -> (i32, i32) {
    %c0_i32 = arith.constant 0 : i32
    %c0_i32_0 = arith.constant 0 : i32
    %c0_i32_1 = arith.constant 0 : i32
    return %c0_i32, %c0_i32_0 : i32, i32
  }
  func.func @transform_5(%arg0: i32) -> (i32, i32) {
    %c0_i32 = arith.constant 0 : i32
    %c0_i32_0 = arith.constant 0 : i32
    %c0_i32_1 = arith.constant 0 : i32
    return %c0_i32, %c0_i32_0 : i32, i32
  }
  func.func @transform_6(%arg0: i32) -> (i32, i32) {
    %c0_i32 = arith.constant 0 : i32
    %c0_i32_0 = arith.constant 0 : i32
    %c0_i32_1 = arith.constant 0 : i32
    return %c0_i32, %c0_i32_0 : i32, i32
  }
  func.func @transform_7(%arg0: i32) -> (i32, i32) {
    %c0_i32 = arith.constant 0 : i32
    %c0_i32_0 = arith.constant 0 : i32
    %c0_i32_1 = arith.constant 0 : i32
    return %c0_i32, %c0_i32_0 : i32, i32
  }
  func.func @transform_8(%arg0: i32) -> (i32, i32) {
    %c0_i32 = arith.constant 0 : i32
    %c0_i32_0 = arith.constant 0 : i32
    %c0_i32_1 = arith.constant 0 : i32
    return %c0_i32, %c0_i32_0 : i32, i32
  }
  func.func @transform_9(%arg0: i32) -> (i32, i32) {
    %c0_i32 = arith.constant 0 : i32
    %c0_i32_0 = arith.constant 0 : i32
    %c0_i32_1 = arith.constant 0 : i32
    return %c0_i32, %c0_i32_0 : i32, i32
  }
  func.func @transform_10(%arg0: i32) -> (i32, i32) {
    %c0_i32 = arith.constant 0 : i32
    %c0_i32_0 = arith.constant 0 : i32
    %c0_i32_1 = arith.constant 0 : i32
    return %c0_i32, %c0_i32_0 : i32, i32
  }
  func.func @transform_11(%arg0: i32) -> (i32, i32) {
    %c0_i32 = arith.constant 0 : i32
    %c0_i32_0 = arith.constant 0 : i32
    %c0_i32_1 = arith.constant 0 : i32
    return %c0_i32, %c0_i32_0 : i32, i32
  }
  func.func @transform_12(%arg0: i32) -> (i32, i32) {
    %c0_i32 = arith.constant 0 : i32
    %c0_i32_0 = arith.constant 0 : i32
    %c0_i32_1 = arith.constant 0 : i32
    return %c0_i32, %c0_i32_0 : i32, i32
  }
  func.func @transform_13(%arg0: i32) -> (i32, i32) {
    %c0_i32 = arith.constant 0 : i32
    %c0_i32_0 = arith.constant 0 : i32
    %c0_i32_1 = arith.constant 0 : i32
    return %c0_i32, %c0_i32_0 : i32, i32
  }
}

</mosaic_0001>

<llo_original>
// kernel: tpu_custom_call.1
$region0: #{tpu_custom_call.1}
  #allocation0 [shape = 'u32[]', space=smem, size = 0x4, offset = 0x4, fixed_abs, tag = 'smem constant byte address 0x4 - core index']
  #allocation1 [shape = 'u32[144,128]{1,0:T(1,128)}', space=vmem, size = 0x12000, scoped, tag = 'internal scratch']
  %s0 = inlined_call_operand.hbm [shape: bf16[16,64], index: 0, kind: input, shape index: {}]
  %s1 = inlined_call_operand.vmem [shape: bf16[64,256], index: 1, kind: input, shape index: {}]
  %s2 = inlined_call_operand.vmem [shape: bf16[256,64], index: 2, kind: input, shape index: {}]
  %s3 = inlined_call_operand.vmem [shape: bf16[64,64], index: 3, kind: input, shape index: {}]
  %s4 = inlined_call_operand.hbm [shape: bf16[64,64], index: 4, kind: input, shape index: {}]
  %s5 = inlined_call_operand.hbm [shape: bf16[64,64], index: 5, kind: input, shape index: {}]
  %s6 = inlined_call_operand.hbm [shape: bf16[64,64], index: 6, kind: input, shape index: {}]
  %s7 = inlined_call_operand.vmem [shape: bf16[64,256], index: 7, kind: input, shape index: {}]
  %s8 = inlined_call_operand.vmem [shape: bf16[256,64], index: 8, kind: input, shape index: {}]
  %s9 = inlined_call_operand.vmem [shape: bf16[256,256], index: 9, kind: input, shape index: {}]
  %s10 = inlined_call_operand.hbm [shape: f32[9,256], index: 10, kind: input, shape index: {}]
  %s11 = inlined_call_operand.vmem [shape: f32[1,256], index: 11, kind: input, shape index: {}]
  %s12 = inlined_call_operand.vmem [shape: f32[1,64], index: 12, kind: input, shape index: {}]
  %s13 = inlined_call_operand.hbm [shape: f32[16,64], index: 13, kind: output, shape index: {}]
  %s14 = sld [smem:[#allocation0]]
  $region82: #{tpu_custom_call.1} parent=0
    _
  %s16 = ssub.s32 1, %s14
  %s17 = scalar_select 0, %s16, %s14
  $region1: #{tpu_custom_call.1} parent=0
    #allocation2 [shape = 'u8[4096]{0}', space=vmem, size = 0x1000, scoped, tag = 'input window, operand 0, single buffered']
    #allocation3 [shape = 's32[1]{0}', space=sflag, size = 0x4, scoped, tag = 'scoped memory for tpu_custom_call.1']
    #allocation4 [shape = 's32[1]{0}', space=sflag, size = 0x4, scoped, tag = 'scoped memory for tpu_custom_call.1']
    #allocation5 [shape = 'u8[16384]{0}', space=vmem, size = 0x4000, scoped, tag = 'input window, operand 4, single buffered']
    #allocation6 [shape = 's32[1]{0}', space=sflag, size = 0x4, scoped, tag = 'scoped memory for tpu_custom_call.1']
    #allocation7 [shape = 'u8[16384]{0}', space=vmem, size = 0x4000, scoped, tag = 'input window, operand 5, single buffered']
    #allocation8 [shape = 'u8[16384]{0}', space=vmem, size = 0x4000, scoped, tag = 'input window, operand 6, single buffered']
    #allocation9 [shape = 's32[1]{0}', space=sflag, size = 0x4, scoped, tag = 'scoped memory for tpu_custom_call.1']
    #allocation10 [shape = 'u8[16384]{0}', space=vmem, size = 0x4000, scoped, tag = 'input window, operand 10, single buffered']
    #allocation11 [shape = 'u8[8192]{0}', space=vmem, size = 0x2000, scoped, tag = 'output window, operand 0, single buffered']
    %18 = vsyncpa [#allocation3], 0
    %19 = vsyncpa [#allocation6], 0
    %20 = vsyncpa [#allocation9], 0
    %21 = vsyncpa [#allocation4], 0
    // Predicated region
    $region2: #{tpu_custom_call.1} parent=1 // pred_check
      _
    $region3: #{tpu_custom_call.1} parent=1 // pred_check_branch
      %23 = sbr.rel (0) target = $region5
    $region4: #{tpu_custom_call.1} parent=1 // pred_region
      %s25 = ssub.s32 128, 128
      %26 = vsyncadd [#allocation3], %s25
      %s27 = sshll.u32 [#allocation2], 4
      %s28 = int_to_ptr.vmem [resolvable:$true] %s27
      %33 = dma.hbm_to_vmem [thread:$0]  %s0, 128, %s28, [#allocation3], 64, 64, 4
    $region5: #{tpu_custom_call.1} parent=1 // pred_fallthru
      _
    // Predicated region
    $region6: #{tpu_custom_call.1} parent=1 // pred_check
      _
    $region7: #{tpu_custom_call.1} parent=1 // pred_check_branch
      %35 = sbr.rel (0) target = $region9
    $region8: #{tpu_custom_call.1} parent=1 // pred_region
      _
    $region9: #{tpu_custom_call.1} parent=1 // pred_fallthru
      _
    // Predicated region
    $region10: #{tpu_custom_call.1} parent=1 // pred_check
      _
    $region11: #{tpu_custom_call.1} parent=1 // pred_check_branch
      %37 = sbr.rel (0) target = $region13
    $region12: #{tpu_custom_call.1} parent=1 // pred_region
      _
    $region13: #{tpu_custom_call.1} parent=1 // pred_fallthru
      _
    // Predicated region
    $region14: #{tpu_custom_call.1} parent=1 // pred_check
      _
    $region15: #{tpu_custom_call.1} parent=1 // pred_check_branch
      %39 = sbr.rel (0) target = $region17
    $region16: #{tpu_custom_call.1} parent=1 // pred_region
      _
    $region17: #{tpu_custom_call.1} parent=1 // pred_fallthru
      _
    // Predicated region
    $region18: #{tpu_custom_call.1} parent=1 // pred_check
      _
    $region19: #{tpu_custom_call.1} parent=1 // pred_check_branch
      %41 = sbr.rel (0) target = $region21
    $region20: #{tpu_custom_call.1} parent=1 // pred_region
      %s43 = ssub.s32 512, 512
      %44 = vsyncadd [#allocation6], %s43
      %s45 = sshll.u32 [#allocation5], 4
      %s46 = int_to_ptr.vmem [resolvable:$true] %s45
      %51 = dma.hbm_to_vmem [thread:$0]  %s4, 512, %s46, [#allocation6], 64, 64, 4
    $region21: #{tpu_custom_call.1} parent=1 // pred_fallthru
      _
    // Predicated region
    $region22: #{tpu_custom_call.1} parent=1 // pred_check
      _
    $region23: #{tpu_custom_call.1} parent=1 // pred_check_branch
      %53 = sbr.rel (0) target = $region25
    $region24: #{tpu_custom_call.1} parent=1 // pred_region
      %s55 = ssub.s32 512, 512
      %56 = vsyncadd [#allocation6], %s55
      %s57 = sshll.u32 [#allocation7], 4
      %s58 = int_to_ptr.vmem [resolvable:$true] %s57
      %63 = dma.hbm_to_vmem [thread:$0]  %s5, 512, %s58, [#allocation6], 64, 64, 4
    $region25: #{tpu_custom_call.1} parent=1 // pred_fallthru
      _
    // Predicated region
    $region26: #{tpu_custom_call.1} parent=1 // pred_check
      _
    $region27: #{tpu_custom_call.1} parent=1 // pred_check_branch
      %65 = sbr.rel (0) target = $region29
    $region28: #{tpu_custom_call.1} parent=1 // pred_region
      %s67 = ssub.s32 512, 512
      %68 = vsyncadd [#allocation9], %s67
      %s69 = sshll.u32 [#allocation8], 4
      %s70 = int_to_ptr.vmem [resolvable:$true] %s69
      %75 = dma.hbm_to_vmem [thread:$0]  %s6, 512, %s70, [#allocation9], 64, 64, 4
    $region29: #{tpu_custom_call.1} parent=1 // pred_fallthru
      _
    // Predicated region
    $region30: #{tpu_custom_call.1} parent=1 // pred_check
      _
    $region31: #{tpu_custom_call.1} parent=1 // pred_check_branch
      %77 = sbr.rel (0) target = $region33
    $region32: #{tpu_custom_call.1} parent=1 // pred_region
      _
    $region33: #{tpu_custom_call.1} parent=1 // pred_fallthru
      _
    // Predicated region
    $region34: #{tpu_custom_call.1} parent=1 // pred_check
      _
    $region35: #{tpu_custom_call.1} parent=1 // pred_check_branch
      %79 = sbr.rel (0) target = $region37
    $region36: #{tpu_custom_call.1} parent=1 // pred_region
      _
    $region37: #{tpu_custom_call.1} parent=1 // pred_fallthru
      _
    // Predicated region
    $region38: #{tpu_custom_call.1} parent=1 // pred_check
      _
    $region39: #{tpu_custom_call.1} parent=1 // pred_check_branch
      %81 = sbr.rel (0) target = $region41
    $region40: #{tpu_custom_call.1} parent=1 // pred_region
      _
    $region41: #{tpu_custom_call.1} parent=1 // pred_fallthru
      _
    // Predicated region
    $region42: #{tpu_custom_call.1} parent=1 // pred_check
      _
    $region43: #{tpu_custom_call.1} parent=1 // pred_check_branch
      %83 = sbr.rel (0) target = $region45
    $region44: #{tpu_custom_call.1} parent=1 // pred_region
      %s85 = ssub.s32 512, 512
      %86 = vsyncadd [#allocation9], %s85
      %s87 = sshll.u32 [#allocation10], 4
      %s88 = int_to_ptr.vmem [resolvable:$true] %s87
      %93 = dma.hbm_to_vmem [thread:$0]  %s10, 512, %s88, [#allocation9], 256, 256, 16
    $region45: #{tpu_custom_call.1} parent=1 // pred_fallthru
      _
    // Predicated region
    $region46: #{tpu_custom_call.1} parent=1 // pred_check
      _
    $region47: #{tpu_custom_call.1} parent=1 // pred_check_branch
      %95 = sbr.rel (0) target = $region49
    $region48: #{tpu_custom_call.1} parent=1 // pred_region
      _
    $region49: #{tpu_custom_call.1} parent=1 // pred_fallthru
      _
    // Predicated region
    $region50: #{tpu_custom_call.1} parent=1 // pred_check
      _
    $region51: #{tpu_custom_call.1} parent=1 // pred_check_branch
      %97 = sbr.rel (0) target = $region53
    $region52: #{tpu_custom_call.1} parent=1 // pred_region
      _
    $region53: #{tpu_custom_call.1} parent=1 // pred_fallthru
      _
    // Predicated region
    $region54: #{tpu_custom_call.1} parent=1 // pred_check
      _
    $region55: #{tpu_custom_call.1} parent=1 // pred_check_branch
      %99 = sbr.rel (0) target = $region57
    $region56: #{tpu_custom_call.1} parent=1 // pred_region
      %100 = dma.done [#allocation3], 128
    $region57: #{tpu_custom_call.1} parent=1 // pred_fallthru
      _
    // Predicated region
    $region58: #{tpu_custom_call.1} parent=1 // pred_check
      _
    $region59: #{tpu_custom_call.1} parent=1 // pred_check_branch
      %102 = sbr.rel (0) target = $region61
    $region60: #{tpu_custom_call.1} parent=1 // pred_region
      %103 = dma.done [#allocation6], 512
    $region61: #{tpu_custom_call.1} parent=1 // pred_fallthru
      _
    // Predicated region
    $region62: #{tpu_custom_call.1} parent=1 // pred_check
      _
    $region63: #{tpu_custom_call.1} parent=1 // pred_check_branch
      %105 = sbr.rel (0) target = $region65
    $region64: #{tpu_custom_call.1} parent=1 // pred_region
      %106 = dma.done [#allocation6], 512
    $region65: #{tpu_custom_call.1} parent=1 // pred_fallthru
      _
    // Predicated region
    $region66: #{tpu_custom_call.1} parent=1 // pred_check
      _
    $region67: #{tpu_custom_call.1} parent=1 // pred_check_branch
      %108 = sbr.rel (0) target = $region69
    $region68: #{tpu_custom_call.1} parent=1 // pred_region
      %109 = dma.done [#allocation9], 512
    $region69: #{tpu_custom_call.1} parent=1 // pred_fallthru
      _
    // Predicated region
    $region70: #{tpu_custom_call.1} parent=1 // pred_check
      _
    $region71: #{tpu_custom_call.1} parent=1 // pred_check_branch
      %111 = sbr.rel (0) target = $region73
    $region72: #{tpu_custom_call.1} parent=1 // pred_region
      %112 = dma.done [#allocation9], 512
    $region73: #{tpu_custom_call.1} parent=1 // pred_fallthru
      _
    %v114 = vld [vmem:[#allocation2] sm:$0xf]
    %v115 = vld [vmem:[#allocation2 + $0x4] sm:$0xf]
    %v116 = vld [vmem:[%s3] sm:$0xf]
    %v117 = vld [vmem:[%s3 + $0x4] sm:$0xf]
    %v118 = vld [vmem:[%s3 + $0x8] sm:$0xf]
    %v119 = vld [vmem:[%s3 + $0xc] sm:$0xf]
    %v120 = vld [vmem:[%s3 + $0x10] sm:$0xf]
    %v121 = vld [vmem:[%s3 + $0x14] sm:$0xf]
    %v122 = vld [vmem:[%s3 + $0x18] sm:$0xf]
    %v123 = vld [vmem:[%s3 + $0x1c] sm:$0xf]
    %v126 = vunpack.c.l.b16 %v114
    %v127 = vunpack.c.l.b16 %v115
    %v128 = vpack.c.b16 %v127, %v126
    %v137 = vunpack.c.l.b16 %v116
    %v138 = vunpack.c.l.b16 %v117
    %v139 = vunpack.c.l.b16 %v118
    %v140 = vunpack.c.l.b16 %v119
    %v141 = vunpack.c.l.b16 %v120
    %v142 = vunpack.c.l.b16 %v121
    %v143 = vunpack.c.l.b16 %v122
    %v144 = vunpack.c.l.b16 %v123
    %v145 = vpack.c.b16 %v138, %v137
    %v146 = vpack.c.b16 %v140, %v139
    %v147 = vpack.c.b16 %v142, %v141
    %v148 = vpack.c.b16 %v144, %v143
    %vm153 = vcmask 523264
    %v155 = vsel %vm153, %v128, 0
    %157 = vmatprep.subr.bf16.mxu0 0
    %158 = vmatpush1.bf16.msra.mxu0 %v145
    %159 = vmatprep.subr.bf16.mxu0 0
    %160 = vmatpush1.bf16.msra.mxu0 %v146
    %161 = vmatprep.subr.bf16.mxu0 0
    %162 = vmatpush1.bf16.msra.mxu0 %v147
    %163 = vmatprep.subr.bf16.mxu0 0
    %164 = vmatpush1.bf16.msra.mxu0 %v148
    %165 = vmatprep.subr.bf16.mxu0 0
    %166 = vmatpush1.bf16.msra.mxu0 0
    %167 = vmatprep.subr.bf16.mxu0 0
    %168 = vmatpush1.bf16.msra.mxu0 0
    %169 = vmatprep.subr.bf16.mxu0 0
    %170 = vmatpush1.bf16.msra.mxu0 0
    %171 = vmatprep.subr.bf16.mxu0 0
    %172 = vmatpush1.bf16.msra.mxu0 0
    %173 = vmatprep.subr.bf16.mxu0 0
    %174 = vmatpush1.bf16.msra.mxu0 0
    %175 = vmatprep.subr.bf16.mxu0 0
    %176 = vmatpush1.bf16.msra.mxu0 0
    %177 = vmatprep.subr.bf16.mxu0 0
    %178 = vmatpush1.bf16.msra.mxu0 0
    %179 = vmatprep.subr.bf16.mxu0 0
    %180 = vmatpush1.bf16.msra.mxu0 0
    %181 = vmatprep.subr.bf16.mxu0 0
    %182 = vmatpush1.bf16.msra.mxu0 0
    %183 = vmatprep.subr.bf16.mxu0 0
    %184 = vmatpush1.bf16.msra.mxu0 0
    %185 = vmatprep.subr.bf16.mxu0 0
    %186 = vmatpush1.bf16.msra.mxu0 0
    %187 = vmatprep.subr.bf16.mxu0 0
    %188 = vmatpush1.bf16.msra.mxu0 0
    %189 = vmatprep.mubr.bf16.mxu0 0
    %190 = vmatmul.mubr.bf16.gmra.mrb[0].mxu0 %v155
    %v191 = vpop.f32.mrb[0].mxu0
    %v192 = vadd.f32 0.0, %v191
    %v193 = vpop.f32.mrb[0].mxu0
    %v194 = vpop.f32.mrb[0].mxu0
    %v195 = vadd.f32 0.0, %v194
    %v196 = vpop.f32.mrb[0].mxu0
    %197 = vdwg.mxu0
    %v198 = vld [vmem:[#allocation5] sm:$0xf]
    %v199 = vld [vmem:[#allocation5 + $0x4] sm:$0xf]
    %v200 = vld [vmem:[#allocation5 + $0x8] sm:$0xf]
    %v201 = vld [vmem:[#allocation5 + $0xc] sm:$0xf]
    %v202 = vld [vmem:[#allocation5 + $0x10] sm:$0xf]
    %v203 = vld [vmem:[#allocation5 + $0x14] sm:$0xf]
    %v204 = vld [vmem:[#allocation5 + $0x18] sm:$0xf]
    %v205 = vld [vmem:[#allocation5 + $0x1c] sm:$0xf]
    %v206 = vld [vmem:[%s1] sm:$0xff]
    %v207 = vld [vmem:[%s1 + $0x8] sm:$0xff]
    %v208 = vld [vmem:[%s1 + $0x10] sm:$0xff]
    %v209 = vld [vmem:[%s1 + $0x18] sm:$0xff]
    %v210 = vld [vmem:[%s1 + $0x20] sm:$0xff]
    %v211 = vld [vmem:[%s1 + $0x28] sm:$0xff]
    %v212 = vld [vmem:[%s1 + $0x30] sm:$0xff]
    %v213 = vld [vmem:[%s1 + $0x38] sm:$0xff]
    %v222 = vunpack.c.l.b16 %v198
    %v223 = vunpack.c.l.b16 %v199
    %v224 = vunpack.c.l.b16 %v200
    %v225 = vunpack.c.l.b16 %v201
    %v226 = vunpack.c.l.b16 %v202
    %v227 = vunpack.c.l.b16 %v203
    %v228 = vunpack.c.l.b16 %v204
    %v229 = vunpack.c.l.b16 %v205
    %v230 = vpack.c.b16 %v223, %v222
    %v231 = vpack.c.b16 %v225, %v224
    %v232 = vpack.c.b16 %v227, %v226
    %v233 = vpack.c.b16 %v229, %v228
    %v242 = vunpack.c.l.b16 %v206
    %v243 = vunpack.c.h.b16 %v206
    %v244 = vunpack.c.l.b16 %v207
    %v245 = vunpack.c.h.b16 %v207
    %v246 = vunpack.c.l.b16 %v208
    %v247 = vunpack.c.h.b16 %v208
    %v248 = vunpack.c.l.b16 %v209
    %v249 = vunpack.c.h.b16 %v209
    %v250 = vunpack.c.l.b16 %v210
    %v251 = vunpack.c.h.b16 %v210
    %v252 = vunpack.c.l.b16 %v211
    %v253 = vunpack.c.h.b16 %v211
    %v254 = vunpack.c.l.b16 %v212
    %v255 = vunpack.c.h.b16 %v212
    %v256 = vunpack.c.l.b16 %v213
    %v257 = vunpack.c.h.b16 %v213
    %v258 = vpack.c.b16 %v244, %v242
    %v259 = vpack.c.b16 %v245, %v243
    %v260 = vpack.c.b16 %v248, %v246
    %v261 = vpack.c.b16 %v249, %v247
    %v262 = vpack.c.b16 %v252, %v250
    %v263 = vpack.c.b16 %v253, %v251
    %v264 = vpack.c.b16 %v256, %v254
    %v265 = vpack.c.b16 %v257, %v255
    %v275 = vsel %vm153, %v230, 0
    %v278 = vsel %vm153, %v231, 0
    %v281 = vsel %vm153, %v232, 0
    %v284 = vsel %vm153, %v233, 0
    %286 = vmatprep.subr.bf16.mxu0 %v259
    %287 = vmatpush1.bf16.msra.mxu0 %v258
    %288 = vmatprep.subr.bf16.mxu0 %v261
    %289 = vmatpush1.bf16.msra.mxu0 %v260
    %290 = vmatprep.subr.bf16.mxu0 %v263
    %291 = vmatpush1.bf16.msra.mxu0 %v262
    %292 = vmatprep.subr.bf16.mxu0 %v265
    %293 = vmatpush1.bf16.msra.mxu0 %v264
    %294 = vmatprep.subr.bf16.mxu0 0
    %295 = vmatpush1.bf16.msra.mxu0 0
    %296 = vmatprep.subr.bf16.mxu0 0
    %297 = vmatpush1.bf16.msra.mxu0 0
    %298 = vmatprep.subr.bf16.mxu0 0
    %299 = vmatpush1.bf16.msra.mxu0 0
    %300 = vmatprep.subr.bf16.mxu0 0
    %301 = vmatpush1.bf16.msra.mxu0 0
    %302 = vmatprep.subr.bf16.mxu0 0
    %303 = vmatpush1.bf16.msra.mxu0 0
    %304 = vmatprep.subr.bf16.mxu0 0
    %305 = vmatpush1.bf16.msra.mxu0 0
    %306 = vmatprep.subr.bf16.mxu0 0
    %307 = vmatpush1.bf16.msra.mxu0 0
    %308 = vmatprep.subr.bf16.mxu0 0
    %309 = vmatpush1.bf16.msra.mxu0 0
    %310 = vmatprep.subr.bf16.mxu0 0
    %311 = vmatpush1.bf16.msra.mxu0 0
    %312 = vmatprep.subr.bf16.mxu0 0
    %313 = vmatpush1.bf16.msra.mxu0 0
    %314 = vmatprep.subr.bf16.mxu0 0
    %315 = vmatpush1.bf16.msra.mxu0 0
    %316 = vmatprep.subr.bf16.mxu0 0
    %317 = vmatpush1.bf16.msra.mxu0 0
    %318 = vmatprep.mubr.bf16.mxu0 0
    %319 = vmatmul.mubr.bf16.gmra.mrb[0].mxu0 %v275
    %v320 = vpop.f32.mrb[0].mxu0
    %v321 = vadd.f32 0.0, %v320
    %v322 = vpop.f32.mrb[0].mxu0
    %v323 = vadd.f32 0.0, %v322
    %v324 = vpop.f32.mrb[0].mxu0
    %v325 = vadd.f32 0.0, %v324
    %v326 = vpop.f32.mrb[0].mxu0
    %v327 = vadd.f32 0.0, %v326
    %328 = vmatprep.mubr.bf16.mxu0 0
    %329 = vmatmul.mubr.bf16.gmra.mrb[0].mxu0 %v278
    %v330 = vpop.f32.mrb[0].mxu0
    %v331 = vadd.f32 0.0, %v330
    %v332 = vpop.f32.mrb[0].mxu0
    %v333 = vadd.f32 0.0, %v332
    %v334 = vpop.f32.mrb[0].mxu0
    %v335 = vadd.f32 0.0, %v334
    %v336 = vpop.f32.mrb[0].mxu0
    %v337 = vadd.f32 0.0, %v336
    %338 = vmatprep.mubr.bf16.mxu0 0
    %339 = vmatmul.mubr.bf16.gmra.mrb[0].mxu0 %v281
    %v340 = vpop.f32.mrb[0].mxu0
    %v341 = vadd.f32 0.0, %v340
    %v342 = vpop.f32.mrb[0].mxu0
    %v343 = vadd.f32 0.0, %v342
    %v344 = vpop.f32.mrb[0].mxu0
    %v345 = vadd.f32 0.0, %v344
    %v346 = vpop.f32.mrb[0].mxu0
    %v347 = vadd.f32 0.0, %v346
    %348 = vmatprep.mubr.bf16.mxu0 0
    %349 = vmatmul.mubr.bf16.gmra.mrb[0].mxu0 %v284
    %v350 = vpop.f32.mrb[0].mxu0
    %v351 = vadd.f32 0.0, %v350
    %v352 = vpop.f32.mrb[0].mxu0
    %v353 = vadd.f32 0.0, %v352
    %v354 = vpop.f32.mrb[0].mxu0
    %v355 = vadd.f32 0.0, %v354
    %v356 = vpop.f32.mrb[0].mxu0
    %v357 = vadd.f32 0.0, %v356
    %358 = vdwg.mxu0
    %v359 = vld [vmem:[%s2] sm:$0xf]
    %v360 = vld [vmem:[%s2 + $0x4] sm:$0xf]
    %v361 = vld [vmem:[%s2 + $0x8] sm:$0xf]
    %v362 = vld [vmem:[%s2 + $0xc] sm:$0xf]
    %v363 = vld [vmem:[%s2 + $0x10] sm:$0xf]
    %v364 = vld [vmem:[%s2 + $0x14] sm:$0xf]
    %v365 = vld [vmem:[%s2 + $0x18] sm:$0xf]
    %v366 = vld [vmem:[%s2 + $0x1c] sm:$0xf]
    %v367 = vld [vmem:[%s2 + $0x20] sm:$0xf]
    %v368 = vld [vmem:[%s2 + $0x24] sm:$0xf]
    %v369 = vld [vmem:[%s2 + $0x28] sm:$0xf]
    %v370 = vld [vmem:[%s2 + $0x2c] sm:$0xf]
    %v371 = vld [vmem:[%s2 + $0x30] sm:$0xf]
    %v372 = vld [vmem:[%s2 + $0x34] sm:$0xf]
    %v373 = vld [vmem:[%s2 + $0x38] sm:$0xf]
    %v374 = vld [vmem:[%s2 + $0x3c] sm:$0xf]
    %v375 = vld [vmem:[%s2 + $0x40] sm:$0xf]
    %v376 = vld [vmem:[%s2 + $0x44] sm:$0xf]
    %v377 = vld [vmem:[%s2 + $0x48] sm:$0xf]
    %v378 = vld [vmem:[%s2 + $0x4c] sm:$0xf]
    %v379 = vld [vmem:[%s2 + $0x50] sm:$0xf]
    %v380 = vld [vmem:[%s2 + $0x54] sm:$0xf]
    %v381 = vld [vmem:[%s2 + $0x58] sm:$0xf]
    %v382 = vld [vmem:[%s2 + $0x5c] sm:$0xf]
    %v383 = vld [vmem:[%s2 + $0x60] sm:$0xf]
    %v384 = vld [vmem:[%s2 + $0x64] sm:$0xf]
    %v385 = vld [vmem:[%s2 + $0x68] sm:$0xf]
    %v386 = vld [vmem:[%s2 + $0x6c] sm:$0xf]
    %v387 = vld [vmem:[%s2 + $0x70] sm:$0xf]
    %v388 = vld [vmem:[%s2 + $0x74] sm:$0xf]
    %v389 = vld [vmem:[%s2 + $0x78] sm:$0xf]
    %v390 = vld [vmem:[%s2 + $0x7c] sm:$0xf]
    %v391 = vld [vmem:[#allocation7] sm:$0xf]
    %v392 = vld [vmem:[#allocation7 + $0x4] sm:$0xf]
    %v393 = vld [vmem:[#allocation7 + $0x8] sm:$0xf]
    %v394 = vld [vmem:[#allocation7 + $0xc] sm:$0xf]
    %v395 = vld [vmem:[#allocation7 + $0x10] sm:$0xf]
    %v396 = vld [vmem:[#allocation7 + $0x14] sm:$0xf]
    %v397 = vld [vmem:[#allocation7 + $0x18] sm:$0xf]
    %v398 = vld [vmem:[#allocation7 + $0x1c] sm:$0xf]
    %v431 = vunpack.c.l.b16 %v359
    %v432 = vunpack.c.l.b16 %v360
    %v433 = vunpack.c.l.b16 %v361
    %v434 = vunpack.c.l.b16 %v362
    %v435 = vunpack.c.l.b16 %v363
    %v436 = vunpack.c.l.b16 %v364
    %v437 = vunpack.c.l.b16 %v365
    %v438 = vunpack.c.l.b16 %v366
    %v439 = vunpack.c.l.b16 %v367
    %v440 = vunpack.c.l.b16 %v368
    %v441 = vunpack.c.l.b16 %v369
    %v442 = vunpack.c.l.b16 %v370
    %v443 = vunpack.c.l.b16 %v371
    %v444 = vunpack.c.l.b16 %v372
    %v445 = vunpack.c.l.b16 %v373
    %v446 = vunpack.c.l.b16 %v374
    %v447 = vunpack.c.l.b16 %v375
    %v448 = vunpack.c.l.b16 %v376
    %v449 = vunpack.c.l.b16 %v377
    %v450 = vunpack.c.l.b16 %v378
    %v451 = vunpack.c.l.b16 %v379
    %v452 = vunpack.c.l.b16 %v380
    %v453 = vunpack.c.l.b16 %v381
    %v454 = vunpack.c.l.b16 %v382
    %v455 = vunpack.c.l.b16 %v383
    %v456 = vunpack.c.l.b16 %v384
    %v457 = vunpack.c.l.b16 %v385
    %v458 = vunpack.c.l.b16 %v386
    %v459 = vunpack.c.l.b16 %v387
    %v460 = vunpack.c.l.b16 %v388
    %v461 = vunpack.c.l.b16 %v389
    %v462 = vunpack.c.l.b16 %v390
    %v463 = vpack.c.b16 %v432, %v431
    %v464 = vpack.c.b16 %v434, %v433
    %v465 = vpack.c.b16 %v436, %v435
    %v466 = vpack.c.b16 %v438, %v437
    %v467 = vpack.c.b16 %v440, %v439
    %v468 = vpack.c.b16 %v442, %v441
    %v469 = vpack.c.b16 %v444, %v443
    %v470 = vpack.c.b16 %v446, %v445
    %v471 = vpack.c.b16 %v448, %v447
    %v472 = vpack.c.b16 %v450, %v449
    %v473 = vpack.c.b16 %v452, %v451
    %v474 = vpack.c.b16 %v454, %v453
    %v475 = vpack.c.b16 %v456, %v455
    %v476 = vpack.c.b16 %v458, %v457
    %v477 = vpack.c.b16 %v460, %v459
    %v478 = vpack.c.b16 %v462, %v461
    %v487 = vunpack.c.l.b16 %v391
    %v488 = vunpack.c.l.b16 %v392
    %v489 = vunpack.c.l.b16 %v393
    %v490 = vunpack.c.l.b16 %v394
    %v491 = vunpack.c.l.b16 %v395
    %v492 = vunpack.c.l.b16 %v396
    %v493 = vunpack.c.l.b16 %v397
    %v494 = vunpack.c.l.b16 %v398
    %v495 = vpack.c.b16 %v488, %v487
    %v496 = vpack.c.b16 %v490, %v489
    %v497 = vpack.c.b16 %v492, %v491
    %v498 = vpack.c.b16 %v494, %v493
    %v504 = vsel %vm153, %v463, 0
    %v507 = vsel %vm153, %v464, 0
    %v510 = vsel %vm153, %v465, 0
    %v513 = vsel %vm153, %v466, 0
    %v516 = vsel %vm153, %v467, 0
    %v519 = vsel %vm153, %v468, 0
    %v522 = vsel %vm153, %v469, 0
    %v525 = vsel %vm153, %v470, 0
    %v528 = vsel %vm153, %v471, 0
    %v531 = vsel %vm153, %v472, 0
    %v534 = vsel %vm153, %v473, 0
    %v537 = vsel %vm153, %v474, 0
    %v540 = vsel %vm153, %v475, 0
    %v543 = vsel %vm153, %v476, 0
    %v546 = vsel %vm153, %v477, 0
    %v549 = vsel %vm153, %v478, 0
    %551 = vmatprep.subr.bf16.mxu0 0
    %552 = vmatpush1.bf16.msra.mxu0 %v495
    %553 = vmatprep.subr.bf16.mxu0 0
    %554 = vmatpush1.bf16.msra.mxu0 %v496
    %555 = vmatprep.subr.bf16.mxu0 0
    %556 = vmatpush1.bf16.msra.mxu0 %v497
    %557 = vmatprep.subr.bf16.mxu0 0
    %558 = vmatpush1.bf16.msra.mxu0 %v498
    %559 = vmatprep.subr.bf16.mxu0 0
    %560 = vmatpush1.bf16.msra.mxu0 0
    %561 = vmatprep.subr.bf16.mxu0 0
    %562 = vmatpush1.bf16.msra.mxu0 0
    %563 = vmatprep.subr.bf16.mxu0 0
    %564 = vmatpush1.bf16.msra.mxu0 0
    %565 = vmatprep.subr.bf16.mxu0 0
    %566 = vmatpush1.bf16.msra.mxu0 0
    %567 = vmatprep.subr.bf16.mxu0 0
    %568 = vmatpush1.bf16.msra.mxu0 0
    %569 = vmatprep.subr.bf16.mxu0 0
    %570 = vmatpush1.bf16.msra.mxu0 0
    %571 = vmatprep.subr.bf16.mxu0 0
    %572 = vmatpush1.bf16.msra.mxu0 0
    %573 = vmatprep.subr.bf16.mxu0 0
    %574 = vmatpush1.bf16.msra.mxu0 0
    %575 = vmatprep.subr.bf16.mxu0 0
    %576 = vmatpush1.bf16.msra.mxu0 0
    %577 = vmatprep.subr.bf16.mxu0 0
    %578 = vmatpush1.bf16.msra.mxu0 0
    %579 = vmatprep.subr.bf16.mxu0 0
    %580 = vmatpush1.bf16.msra.mxu0 0
    %581 = vmatprep.subr.bf16.mxu0 0
    %582 = vmatpush1.bf16.msra.mxu0 0
    %583 = vmatprep.mubr.bf16.mxu0 0
    %584 = vmatmul.mubr.bf16.gmra.mrb[0].mxu0 %v504
    %v585 = vpop.f32.mrb[0].mxu0
    %v586 = vadd.f32 0.0, %v585
    %v587 = vpop.f32.mrb[0].mxu0
    %v588 = vpop.f32.mrb[0].mxu0
    %v589 = vadd.f32 0.0, %v588
    %v590 = vpop.f32.mrb[0].mxu0
    %591 = vmatprep.mubr.bf16.mxu0 0
    %592 = vmatmul.mubr.bf16.gmra.mrb[0].mxu0 %v507
    %v593 = vpop.f32.mrb[0].mxu0
    %v594 = vadd.f32 0.0, %v593
    %v595 = vpop.f32.mrb[0].mxu0
    %v596 = vpop.f32.mrb[0].mxu0
    %v597 = vadd.f32 0.0, %v596
    %v598 = vpop.f32.mrb[0].mxu0
    %599 = vmatprep.mubr.bf16.mxu0 0
    %600 = vmatmul.mubr.bf16.gmra.mrb[0].mxu0 %v510
    %v601 = vpop.f32.mrb[0].mxu0
    %v602 = vadd.f32 0.0, %v601
    %v603 = vpop.f32.mrb[0].mxu0
    %v604 = vpop.f32.mrb[0].mxu0
    %v605 = vadd.f32 0.0, %v604
    %v606 = vpop.f32.mrb[0].mxu0
    %607 = vmatprep.mubr.bf16.mxu0 0
    %608 = vmatmul.mubr.bf16.gmra.mrb[0].mxu0 %v513
    %v609 = vpop.f32.mrb[0].mxu0
    %v610 = vadd.f32 0.0, %v609
    %v611 = vpop.f32.mrb[0].mxu0
    %v612 = vpop.f32.mrb[0].mxu0
    %v613 = vadd.f32 0.0, %v612
    %v614 = vpop.f32.mrb[0].mxu0
    %615 = vmatprep.mubr.bf16.mxu0 0
    %616 = vmatmul.mubr.bf16.gmra.mrb[0].mxu0 %v516
    %v617 = vpop.f32.mrb[0].mxu0
    %v618 = vadd.f32 0.0, %v617
    %v619 = vpop.f32.mrb[0].mxu0
    %v620 = vpop.f32.mrb[0].mxu0
    %v621 = vadd.f32 0.0, %v620
    %v622 = vpop.f32.mrb[0].mxu0
    %623 = vmatprep.mubr.bf16.mxu0 0
    %624 = vmatmul.mubr.bf16.gmra.mrb[0].mxu0 %v519
    %v625 = vpop.f32.mrb[0].mxu0
    %v626 = vadd.f32 0.0, %v625
    %v627 = vpop.f32.mrb[0].mxu0
    %v628 = vpop.f32.mrb[0].mxu0
    %v629 = vadd.f32 0.0, %v628
    %v630 = vpop.f32.mrb[0].mxu0
    %631 = vmatprep.mubr.bf16.mxu0 0
    %632 = vmatmul.mubr.bf16.gmra.mrb[0].mxu0 %v522
    %v633 = vpop.f32.mrb[0].mxu0
    %v634 = vadd.f32 0.0, %v633
    %v635 = vpop.f32.mrb[0].mxu0
    %v636 = vpop.f32.mrb[0].mxu0
    %v637 = vadd.f32 0.0, %v636
    %v638 = vpop.f32.mrb[0].mxu0
    %639 = vmatprep.mubr.bf16.mxu0 0
    %640 = vmatmul.mubr.bf16.gmra.mrb[0].mxu0 %v525
    %v641 = vpop.f32.mrb[0].mxu0
    %v642 = vadd.f32 0.0, %v641
    %v643 = vpop.f32.mrb[0].mxu0
    %v644 = vpop.f32.mrb[0].mxu0
    %v645 = vadd.f32 0.0, %v644
    %v646 = vpop.f32.mrb[0].mxu0
    %647 = vmatprep.mubr.bf16.mxu0 0
    %648 = vmatmul.mubr.bf16.gmra.mrb[0].mxu0 %v528
    %v649 = vpop.f32.mrb[0].mxu0
    %v650 = vadd.f32 0.0, %v649
    %v651 = vpop.f32.mrb[0].mxu0
    %v652 = vpop.f32.mrb[0].mxu0
    %v653 = vadd.f32 0.0, %v652
    %v654 = vpop.f32.mrb[0].mxu0
    %655 = vmatprep.mubr.bf16.mxu0 0
    %656 = vmatmul.mubr.bf16.gmra.mrb[0].mxu0 %v531
    %v657 = vpop.f32.mrb[0].mxu0
    %v658 = vadd.f32 0.0, %v657
    %v659 = vpop.f32.mrb[0].mxu0
    %v660 = vpop.f32.mrb[0].mxu0
    %v661 = vadd.f32 0.0, %v660
    %v662 = vpop.f32.mrb[0].mxu0
    %663 = vmatprep.mubr.bf16.mxu0 0
    %664 = vmatmul.mubr.bf16.gmra.mrb[0].mxu0 %v534
    %v665 = vpop.f32.mrb[0].mxu0
    %v666 = vadd.f32 0.0, %v665
    %v667 = vpop.f32.mrb[0].mxu0
    %v668 = vpop.f32.mrb[0].mxu0
    %v669 = vadd.f32 0.0, %v668
    %v670 = vpop.f32.mrb[0].mxu0
    %671 = vmatprep.mubr.bf16.mxu0 0
    %672 = vmatmul.mubr.bf16.gmra.mrb[0].mxu0 %v537
    %v673 = vpop.f32.mrb[0].mxu0
    %v674 = vadd.f32 0.0, %v673
    %v675 = vpop.f32.mrb[0].mxu0
    %v676 = vpop.f32.mrb[0].mxu0
    %v677 = vadd.f32 0.0, %v676
    %v678 = vpop.f32.mrb[0].mxu0
    %679 = vmatprep.mubr.bf16.mxu0 0
    %680 = vmatmul.mubr.bf16.gmra.mrb[0].mxu0 %v540
    %v681 = vpop.f32.mrb[0].mxu0
    %v682 = vadd.f32 0.0, %v681
    %v683 = vpop.f32.mrb[0].mxu0
    %v684 = vpop.f32.mrb[0].mxu0
    %v685 = vadd.f32 0.0, %v684
    %v686 = vpop.f32.mrb[0].mxu0
    %687 = vmatprep.mubr.bf16.mxu0 0
    %688 = vmatmul.mubr.bf16.gmra.mrb[0].mxu0 %v543
    %v689 = vpop.f32.mrb[0].mxu0
    %v690 = vadd.f32 0.0, %v689
    %v691 = vpop.f32.mrb[0].mxu0
    %v692 = vpop.f32.mrb[0].mxu0
    %v693 = vadd.f32 0.0, %v692
    %v694 = vpop.f32.mrb[0].mxu0
    %695 = vmatprep.mubr.bf16.mxu0 0
    %696 = vmatmul.mubr.bf16.gmra.mrb[0].mxu0 %v546
    %v697 = vpop.f32.mrb[0].mxu0
    %v698 = vadd.f32 0.0, %v697
    %v699 = vpop.f32.mrb[0].mxu0
    %v700 = vpop.f32.mrb[0].mxu0
    %v701 = vadd.f32 0.0, %v700
    %v702 = vpop.f32.mrb[0].mxu0
    %703 = vmatprep.mubr.bf16.mxu0 0
    %704 = vmatmul.mubr.bf16.gmra.mrb[0].mxu0 %v549
    %v705 = vpop.f32.mrb[0].mxu0
    %v706 = vadd.f32 0.0, %v705
    %v707 = vpop.f32.mrb[0].mxu0
    %v708 = vpop.f32.mrb[0].mxu0
    %v709 = vadd.f32 0.0, %v708
    %v710 = vpop.f32.mrb[0].mxu0
    %711 = vdwg.mxu0
    %v712 = vpack.c.bf16 %v325, %v321
    %v713 = vpack.c.bf16 %v327, %v323
    %v714 = vpack.c.bf16 %v335, %v331
    %v715 = vpack.c.bf16 %v337, %v333
    %v716 = vpack.c.bf16 %v345, %v341
    %v717 = vpack.c.bf16 %v347, %v343
    %v718 = vpack.c.bf16 %v355, %v351
    %v719 = vpack.c.bf16 %v357, %v353
    %v720 = vld [vmem:[%s7] sm:$0xff]
    %v721 = vld [vmem:[%s7 + $0x8] sm:$0xff]
    %v722 = vld [vmem:[%s7 + $0x10] sm:$0xff]
    %v723 = vld [vmem:[%s7 + $0x18] sm:$0xff]
    %v724 = vld [vmem:[%s7 + $0x20] sm:$0xff]
    %v725 = vld [vmem:[%s7 + $0x28] sm:$0xff]
    %v726 = vld [vmem:[%s7 + $0x30] sm:$0xff]
    %v727 = vld [vmem:[%s7 + $0x38] sm:$0xff]
    %v736 = vunpack.c.l.b16 %v720
    %v737 = vunpack.c.h.b16 %v720
    %v738 = vunpack.c.l.b16 %v721
    %v739 = vunpack.c.h.b16 %v721
    %v740 = vunpack.c.l.b16 %v722
    %v741 = vunpack.c.h.b16 %v722
    %v742 = vunpack.c.l.b16 %v723
    %v743 = vunpack.c.h.b16 %v723
    %v744 = vunpack.c.l.b16 %v724
    %v745 = vunpack.c.h.b16 %v724
    %v746 = vunpack.c.l.b16 %v725
    %v747 = vunpack.c.h.b16 %v725
    %v748 = vunpack.c.l.b16 %v726
    %v749 = vunpack.c.h.b16 %v726
    %v750 = vunpack.c.l.b16 %v727
    %v751 = vunpack.c.h.b16 %v727
    %v752 = vpack.c.b16 %v738, %v736
    %v753 = vpack.c.b16 %v739, %v737
    %v754 = vpack.c.b16 %v742, %v740
    %v755 = vpack.c.b16 %v743, %v741
    %v756 = vpack.c.b16 %v746, %v744
    %v757 = vpack.c.b16 %v747, %v745
    %v758 = vpack.c.b16 %v750, %v748
    %v759 = vpack.c.b16 %v751, %v749
    %v768 = vmul.bf16 %v712, %v752
    %v769 = vmul.bf16 %v713, %v753
    %v770 = vmul.bf16 %v714, %v754
    %v771 = vmul.bf16 %v715, %v755
    %v772 = vmul.bf16 %v716, %v756
    %v773 = vmul.bf16 %v717, %v757
    %v774 = vmul.bf16 %v718, %v758
    %v775 = vmul.bf16 %v719, %v759
    %v776 = vpack.c.bf16 %v589, %v586
    %v777 = vpack.c.bf16 %v597, %v594
    %v778 = vpack.c.bf16 %v605, %v602
    %v779 = vpack.c.bf16 %v613, %v610
    %v780 = vpack.c.bf16 %v621, %v618
    %v781 = vpack.c.bf16 %v629, %v626
    %v782 = vpack.c.bf16 %v637, %v634
    %v783 = vpack.c.bf16 %v645, %v642
    %v784 = vpack.c.bf16 %v653, %v650
    %v785 = vpack.c.bf16 %v661, %v658
    %v786 = vpack.c.bf16 %v669, %v666
    %v787 = vpack.c.bf16 %v677, %v674
    %v788 = vpack.c.bf16 %v685, %v682
    %v789 = vpack.c.bf16 %v693, %v690
    %v790 = vpack.c.bf16 %v701, %v698
    %v791 = vpack.c.bf16 %v709, %v706
    %v792 = vld [vmem:[%s8] sm:$0xf]
    %v793 = vld [vmem:[%s8 + $0x4] sm:$0xf]
    %v794 = vld [vmem:[%s8 + $0x8] sm:$0xf]
    %v795 = vld [vmem:[%s8 + $0xc] sm:$0xf]
    %v796 = vld [vmem:[%s8 + $0x10] sm:$0xf]
    %v797 = vld [vmem:[%s8 + $0x14] sm:$0xf]
    %v798 = vld [vmem:[%s8 + $0x18] sm:$0xf]
    %v799 = vld [vmem:[%s8 + $0x1c] sm:$0xf]
    %v800 = vld [vmem:[%s8 + $0x20] sm:$0xf]
    %v801 = vld [vmem:[%s8 + $0x24] sm:$0xf]
    %v802 = vld [vmem:[%s8 + $0x28] sm:$0xf]
    %v803 = vld [vmem:[%s8 + $0x2c] sm:$0xf]
    %v804 = vld [vmem:[%s8 + $0x30] sm:$0xf]
    %v805 = vld [vmem:[%s8 + $0x34] sm:$0xf]
    %v806 = vld [vmem:[%s8 + $0x38] sm:$0xf]
    %v807 = vld [vmem:[%s8 + $0x3c] sm:$0xf]
    %v808 = vld [vmem:[%s8 + $0x40] sm:$0xf]
    %v809 = vld [vmem:[%s8 + $0x44] sm:$0xf]
    %v810 = vld [vmem:[%s8 + $0x48] sm:$0xf]
    %v811 = vld [vmem:[%s8 + $0x4c] sm:$0xf]
    %v812 = vld [vmem:[%s8 + $0x50] sm:$0xf]
    %v813 = vld [vmem:[%s8 + $0x54] sm:$0xf]
    %v814 = vld [vmem:[%s8 + $0x58] sm:$0xf]
    %v815 = vld [vmem:[%s8 + $0x5c] sm:$0xf]
    %v816 = vld [vmem:[%s8 + $0x60] sm:$0xf]
    %v817 = vld [vmem:[%s8 + $0x64] sm:$0xf]
    %v818 = vld [vmem:[%s8 + $0x68] sm:$0xf]
    %v819 = vld [vmem:[%s8 + $0x6c] sm:$0xf]
    %v820 = vld [vmem:[%s8 + $0x70] sm:$0xf]
    %v821 = vld [vmem:[%s8 + $0x74] sm:$0xf]
    %v822 = vld [vmem:[%s8 + $0x78] sm:$0xf]
    %v823 = vld [vmem:[%s8 + $0x7c] sm:$0xf]
    %v856 = vunpack.c.l.b16 %v792
    %v857 = vunpack.c.l.b16 %v793
    %v858 = vunpack.c.l.b16 %v794
    %v859 = vunpack.c.l.b16 %v795
    %v860 = vunpack.c.l.b16 %v796
    %v861 = vunpack.c.l.b16 %v797
    %v862 = vunpack.c.l.b16 %v798
    %v863 = vunpack.c.l.b16 %v799
    %v864 = vunpack.c.l.b16 %v800
    %v865 = vunpack.c.l.b16 %v801
    %v866 = vunpack.c.l.b16 %v802
    %v867 = vunpack.c.l.b16 %v803
    %v868 = vunpack.c.l.b16 %v804
    %v869 = vunpack.c.l.b16 %v805
    %v870 = vunpack.c.l.b16 %v806
    %v871 = vunpack.c.l.b16 %v807
    %v872 = vunpack.c.l.b16 %v808
    %v873 = vunpack.c.l.b16 %v809
    %v874 = vunpack.c.l.b16 %v810
    %v875 = vunpack.c.l.b16 %v811
    %v876 = vunpack.c.l.b16 %v812
    %v877 = vunpack.c.l.b16 %v813
    %v878 = vunpack.c.l.b16 %v814
    %v879 = vunpack.c.l.b16 %v815
    %v880 = vunpack.c.l.b16 %v816
    %v881 = vunpack.c.l.b16 %v817
    %v882 = vunpack.c.l.b16 %v818
    %v883 = vunpack.c.l.b16 %v819
    %v884 = vunpack.c.l.b16 %v820
    %v885 = vunpack.c.l.b16 %v821
    %v886 = vunpack.c.l.b16 %v822
    %v887 = vunpack.c.l.b16 %v823
    %v888 = vpack.c.b16 %v857, %v856
    %v889 = vpack.c.b16 %v859, %v858
    %v890 = vpack.c.b16 %v861, %v860
    %v891 = vpack.c.b16 %v863, %v862
    %v892 = vpack.c.b16 %v865, %v864
    %v893 = vpack.c.b16 %v867, %v866
    %v894 = vpack.c.b16 %v869, %v868
    %v895 = vpack.c.b16 %v871, %v870
    %v896 = vpack.c.b16 %v873, %v872
    %v897 = vpack.c.b16 %v875, %v874
    %v898 = vpack.c.b16 %v877, %v876
    %v899 = vpack.c.b16 %v879, %v878
    %v900 = vpack.c.b16 %v881, %v880
    %v901 = vpack.c.b16 %v883, %v882
    %v902 = vpack.c.b16 %v885, %v884
    %v903 = vpack.c.b16 %v887, %v886
    %v920 = vmul.bf16 %v776, %v888
    %v921 = vmul.bf16 %v777, %v889
    %v922 = vmul.bf16 %v778, %v890
    %v923 = vmul.bf16 %v779, %v891
    %v924 = vmul.bf16 %v780, %v892
    %v925 = vmul.bf16 %v781, %v893
    %v926 = vmul.bf16 %v782, %v894
    %v927 = vmul.bf16 %v783, %v895
    %v928 = vmul.bf16 %v784, %v896
    %v929 = vmul.bf16 %v785, %v897
    %v930 = vmul.bf16 %v786, %v898
    %v931 = vmul.bf16 %v787, %v899
    %v932 = vmul.bf16 %v788, %v900
    %v933 = vmul.bf16 %v789, %v901
    %v934 = vmul.bf16 %v790, %v902
    %v935 = vmul.bf16 %v791, %v903
    %v936 = vpack.c.bf16 %v195, %v192
    %v938 = vsel %vm153, %v936, 0
    %940 = vmatprep.subr.bf16.mxu0 %v769
    %941 = vmatpush1.bf16.msra.mxu0 %v768
    %942 = vmatprep.subr.bf16.mxu0 %v771
    %943 = vmatpush1.bf16.msra.mxu0 %v770
    %944 = vmatprep.subr.bf16.mxu0 %v773
    %945 = vmatpush1.bf16.msra.mxu0 %v772
    %946 = vmatprep.subr.bf16.mxu0 %v775
    %947 = vmatpush1.bf16.msra.mxu0 %v774
    %948 = vmatprep.subr.bf16.mxu0 0
    %949 = vmatpush1.bf16.msra.mxu0 0
    %950 = vmatprep.subr.bf16.mxu0 0
    %951 = vmatpush1.bf16.msra.mxu0 0
    %952 = vmatprep.subr.bf16.mxu0 0
    %953 = vmatpush1.bf16.msra.mxu0 0
    %954 = vmatprep.subr.bf16.mxu0 0
    %955 = vmatpush1.bf16.msra.mxu0 0
    %956 = vmatprep.subr.bf16.mxu0 0
    %957 = vmatpush1.bf16.msra.mxu0 0
    %958 = vmatprep.subr.bf16.mxu0 0
    %959 = vmatpush1.bf16.msra.mxu0 0
    %960 = vmatprep.subr.bf16.mxu0 0
    %961 = vmatpush1.bf16.msra.mxu0 0
    %962 = vmatprep.subr.bf16.mxu0 0
    %963 = vmatpush1.bf16.msra.mxu0 0
    %964 = vmatprep.subr.bf16.mxu0 0
    %965 = vmatpush1.bf16.msra.mxu0 0
    %966 = vmatprep.subr.bf16.mxu0 0
    %967 = vmatpush1.bf16.msra.mxu0 0
    %968 = vmatprep.subr.bf16.mxu0 0
    %969 = vmatpush1.bf16.msra.mxu0 0
    %970 = vmatprep.subr.bf16.mxu0 0
    %971 = vmatpush1.bf16.msra.mxu0 0
    %972 = vmatprep.mubr.bf16.mxu0 0
    %973 = vmatmul.mubr.bf16.gmra.mrb[0].mxu0 %v938
    %v974 = vpop.f32.mrb[0].mxu0
    %v975 = vadd.f32 0.0, %v974
    %v976 = vpop.f32.mrb[0].mxu0
    %v977 = vadd.f32 0.0, %v976
    %v978 = vpop.f32.mrb[0].mxu0
    %v979 = vadd.f32 0.0, %v978
    %v980 = vpop.f32.mrb[0].mxu0
    %v981 = vadd.f32 0.0, %v980
    %982 = vdwg.mxu0
    %v983 = vmax.f32 %v975, %v977
    %984 = vmax.xlane.f32.xlu0 %v983
    %v985 = vpop.xlane.xlu0 %984
    %v986 = vmax.f32 %v979, %v981
    %987 = vmax.xlane.f32.xlu0 %v986
    %v988 = vpop.xlane.xlu0 %987
    %v989 = vsub.f32 %v975, %v985
    %v990 = vsub.f32 %v977, %v985
    %v991 = vsub.f32 %v979, %v988
    %v992 = vsub.f32 %v981, %v988
    %v993 = vmul.f32 %v989, 1.442695
    %v994 = vpow.pop %v993
    %v995 = vmul.f32 %v990, 1.442695
    %v996 = vpow.pop %v995
    %v997 = vmul.f32 %v991, 1.442695
    %v998 = vpow.pop %v997
    %v999 = vmul.f32 %v992, 1.442695
    %v1000 = vpow.pop %v999
    %v1001 = vpack.c.bf16 %v998, %v994
    %v1002 = vpack.c.bf16 %v1000, %v996
    %v1003 = vld [vmem:[%s9] sm:$0xff]
    %v1004 = vld [vmem:[%s9 + $0x8] sm:$0xff]
    %v1005 = vld [vmem:[%s9 + $0x10] sm:$0xff]
    %v1006 = vld [vmem:[%s9 + $0x18] sm:$0xff]
    %v1007 = vld [vmem:[%s9 + $0x20] sm:$0xff]
    %v1008 = vld [vmem:[%s9 + $0x28] sm:$0xff]
    %v1009 = vld [vmem:[%s9 + $0x30] sm:$0xff]
    %v1010 = vld [vmem:[%s9 + $0x38] sm:$0xff]
    %v1011 = vld [vmem:[%s9 + $0x40] sm:$0xff]
    %v1012 = vld [vmem:[%s9 + $0x48] sm:$0xff]
    %v1013 = vld [vmem:[%s9 + $0x50] sm:$0xff]
    %v1014 = vld [vmem:[%s9 + $0x58] sm:$0xff]
    %v1015 = vld [vmem:[%s9 + $0x60] sm:$0xff]
    %v1016 = vld [vmem:[%s9 + $0x68] sm:$0xff]
    %v1017 = vld [vmem:[%s9 + $0x70] sm:$0xff]
    %v1018 = vld [vmem:[%s9 + $0x78] sm:$0xff]
    %v1019 = vld [vmem:[%s9 + $0x80] sm:$0xff]
    %v1020 = vld [vmem:[%s9 + $0x88] sm:$0xff]
    %v1021 = vld [vmem:[%s9 + $0x90] sm:$0xff]
    %v1022 = vld [vmem:[%s9 + $0x98] sm:$0xff]
    %v1023 = vld [vmem:[%s9 + $0xa0] sm:$0xff]
    %v1024 = vld [vmem:[%s9 + $0xa8] sm:$0xff]
    %v1025 = vld [vmem:[%s9 + $0xb0] sm:$0xff]
    %v1026 = vld [vmem:[%s9 + $0xb8] sm:$0xff]
    %v1027 = vld [vmem:[%s9 + $0xc0] sm:$0xff]
    %v1028 = vld [vmem:[%s9 + $0xc8] sm:$0xff]
    %v1029 = vld [vmem:[%s9 + $0xd0] sm:$0xff]
    %v1030 = vld [vmem:[%s9 + $0xd8] sm:$0xff]
    %v1031 = vld [vmem:[%s9 + $0xe0] sm:$0xff]
    %v1032 = vld [vmem:[%s9 + $0xe8] sm:$0xff]
    %v1033 = vld [vmem:[%s9 + $0xf0] sm:$0xff]
    %v1034 = vld [vmem:[%s9 + $0xf8] sm:$0xff]
    %v1067 = vunpack.c.l.b16 %v1003
    %v1068 = vunpack.c.h.b16 %v1003
    %v1069 = vunpack.c.l.b16 %v1004
    %v1070 = vunpack.c.h.b16 %v1004
    %v1071 = vunpack.c.l.b16 %v1005
    %v1072 = vunpack.c.h.b16 %v1005
    %v1073 = vunpack.c.l.b16 %v1006
    %v1074 = vunpack.c.h.b16 %v1006
    %v1075 = vunpack.c.l.b16 %v1007
    %v1076 = vunpack.c.h.b16 %v1007
    %v1077 = vunpack.c.l.b16 %v1008
    %v1078 = vunpack.c.h.b16 %v1008
    %v1079 = vunpack.c.l.b16 %v1009
    %v1080 = vunpack.c.h.b16 %v1009
    %v1081 = vunpack.c.l.b16 %v1010
    %v1082 = vunpack.c.h.b16 %v1010
    %v1083 = vunpack.c.l.b16 %v1011
    %v1084 = vunpack.c.h.b16 %v1011
    %v1085 = vunpack.c.l.b16 %v1012
    %v1086 = vunpack.c.h.b16 %v1012
    %v1087 = vunpack.c.l.b16 %v1013
    %v1088 = vunpack.c.h.b16 %v1013
    %v1089 = vunpack.c.l.b16 %v1014
    %v1090 = vunpack.c.h.b16 %v1014
    %v1091 = vunpack.c.l.b16 %v1015
    %v1092 = vunpack.c.h.b16 %v1015
    %v1093 = vunpack.c.l.b16 %v1016
    %v1094 = vunpack.c.h.b16 %v1016
    %v1095 = vunpack.c.l.b16 %v1017
    %v1096 = vunpack.c.h.b16 %v1017
    %v1097 = vunpack.c.l.b16 %v1018
    %v1098 = vunpack.c.h.b16 %v1018
    %v1099 = vunpack.c.l.b16 %v1019
    %v1100 = vunpack.c.h.b16 %v1019
    %v1101 = vunpack.c.l.b16 %v1020
    %v1102 = vunpack.c.h.b16 %v1020
    %v1103 = vunpack.c.l.b16 %v1021
    %v1104 = vunpack.c.h.b16 %v1021
    %v1105 = vunpack.c.l.b16 %v1022
    %v1106 = vunpack.c.h.b16 %v1022
    %v1107 = vunpack.c.l.b16 %v1023
    %v1108 = vunpack.c.h.b16 %v1023
    %v1109 = vunpack.c.l.b16 %v1024
    %v1110 = vunpack.c.h.b16 %v1024
    %v1111 = vunpack.c.l.b16 %v1025
    %v1112 = vunpack.c.h.b16 %v1025
    %v1113 = vunpack.c.l.b16 %v1026
    %v1114 = vunpack.c.h.b16 %v1026
    %v1115 = vunpack.c.l.b16 %v1027
    %v1116 = vunpack.c.h.b16 %v1027
    %v1117 = vunpack.c.l.b16 %v1028
    %v1118 = vunpack.c.h.b16 %v1028
    %v1119 = vunpack.c.l.b16 %v1029
    %v1120 = vunpack.c.h.b16 %v1029
    %v1121 = vunpack.c.l.b16 %v1030
    %v1122 = vunpack.c.h.b16 %v1030
    %v1123 = vunpack.c.l.b16 %v1031
    %v1124 = vunpack.c.h.b16 %v1031
    %v1125 = vunpack.c.l.b16 %v1032
    %v1126 = vunpack.c.h.b16 %v1032
    %v1127 = vunpack.c.l.b16 %v1033
    %v1128 = vunpack.c.h.b16 %v1033
    %v1129 = vunpack.c.l.b16 %v1034
    %v1130 = vunpack.c.h.b16 %v1034
    %v1131 = vpack.c.b16 %v1069, %v1067
    %v1132 = vpack.c.b16 %v1070, %v1068
    %v1133 = vpack.c.b16 %v1073, %v1071
    %v1134 = vpack.c.b16 %v1074, %v1072
    %v1135 = vpack.c.b16 %v1077, %v1075
    %v1136 = vpack.c.b16 %v1078, %v1076
    %v1137 = vpack.c.b16 %v1081, %v1079
    %v1138 = vpack.c.b16 %v1082, %v1080
    %v1139 = vpack.c.b16 %v1085, %v1083
    %v1140 = vpack.c.b16 %v1086, %v1084
    %v1141 = vpack.c.b16 %v1089, %v1087
    %v1142 = vpack.c.b16 %v1090, %v1088
    %v1143 = vpack.c.b16 %v1093, %v1091
    %v1144 = vpack.c.b16 %v1094, %v1092
    %v1145 = vpack.c.b16 %v1097, %v1095
    %v1146 = vpack.c.b16 %v1098, %v1096
    %v1147 = vpack.c.b16 %v1101, %v1099
    %v1148 = vpack.c.b16 %v1102, %v1100
    %v1149 = vpack.c.b16 %v1105, %v1103
    %v1150 = vpack.c.b16 %v1106, %v1104
    %v1151 = vpack.c.b16 %v1109, %v1107
    %v1152 = vpack.c.b16 %v1110, %v1108
    %v1153 = vpack.c.b16 %v1113, %v1111
    %v1154 = vpack.c.b16 %v1114, %v1112
    %v1155 = vpack.c.b16 %v1117, %v1115
    %v1156 = vpack.c.b16 %v1118, %v1116
    %v1157 = vpack.c.b16 %v1121, %v1119
    %v1158 = vpack.c.b16 %v1122, %v1120
    %v1159 = vpack.c.b16 %v1125, %v1123
    %v1160 = vpack.c.b16 %v1126, %v1124
    %v1161 = vpack.c.b16 %v1129, %v1127
    %v1162 = vpack.c.b16 %v1130, %v1128
    %1195 = vmatprep.subr.bf16.mxu0 %v1132
    %1196 = vmatpush1.bf16.msra.mxu0 %v1131
    %1197 = vmatprep.subr.bf16.mxu0 %v1134
    %1198 = vmatpush1.bf16.msra.mxu0 %v1133
    %1199 = vmatprep.subr.bf16.mxu0 %v1136
    %1200 = vmatpush1.bf16.msra.mxu0 %v1135
    %1201 = vmatprep.subr.bf16.mxu0 %v1138
    %1202 = vmatpush1.bf16.msra.mxu0 %v1137
    %1203 = vmatprep.subr.bf16.mxu0 %v1140
    %1204 = vmatpush1.bf16.msra.mxu0 %v1139
    %1205 = vmatprep.subr.bf16.mxu0 %v1142
    %1206 = vmatpush1.bf16.msra.mxu0 %v1141
    %1207 = vmatprep.subr.bf16.mxu0 %v1144
    %1208 = vmatpush1.bf16.msra.mxu0 %v1143
    %1209 = vmatprep.subr.bf16.mxu0 %v1146
    %1210 = vmatpush1.bf16.msra.mxu0 %v1145
    %1211 = vmatprep.subr.bf16.mxu0 %v1148
    %1212 = vmatpush1.bf16.msra.mxu0 %v1147
    %1213 = vmatprep.subr.bf16.mxu0 %v1150
    %1214 = vmatpush1.bf16.msra.mxu0 %v1149
    %1215 = vmatprep.subr.bf16.mxu0 %v1152
    %1216 = vmatpush1.bf16.msra.mxu0 %v1151
    %1217 = vmatprep.subr.bf16.mxu0 %v1154
    %1218 = vmatpush1.bf16.msra.mxu0 %v1153
    %1219 = vmatprep.subr.bf16.mxu0 %v1156
    %1220 = vmatpush1.bf16.msra.mxu0 %v1155
    %1221 = vmatprep.subr.bf16.mxu0 %v1158
    %1222 = vmatpush1.bf16.msra.mxu0 %v1157
    %1223 = vmatprep.subr.bf16.mxu0 %v1160
    %1224 = vmatpush1.bf16.msra.mxu0 %v1159
    %1225 = vmatprep.subr.bf16.mxu0 %v1162
    %1226 = vmatpush1.bf16.msra.mxu0 %v1161
    %1227 = vmatprep.mubr.bf16.mxu0 %v1002
    %1228 = vmatmul.mubr.bf16.gmra.mrb[0].mxu0 %v1001
    %v1229 = vpop.f32.mrb[0].mxu0
    %v1230 = vadd.f32 0.0, %v1229
    %v1231 = vpop.f32.mrb[0].mxu0
    %v1232 = vadd.f32 0.0, %v1231
    %v1233 = vpop.f32.mrb[0].mxu0
    %v1234 = vadd.f32 0.0, %v1233
    %v1235 = vpop.f32.mrb[0].mxu0
    %v1236 = vadd.f32 0.0, %v1235
    %1237 = vdwg.mxu0
    %v1238 = vrcp.pop %v1230
    %v1239 = vrcp.pop %v1232
    %v1240 = vrcp.pop %v1234
    %v1241 = vrcp.pop %v1236
    %v1242 = vmul.f32 %v994, %v1238
    %v1243 = vmul.f32 %v996, %v1239
    %v1244 = vmul.f32 %v998, %v1240
    %v1245 = vmul.f32 %v1000, %v1241
    %v1246 = vlaneseq
    %v1247 = vshrl.u32 %v1246, 7
    %v1248 = vadd.s32 %v1247, 8
    %vm1249 = vcmp.gt.s32.totalorder %v1247, 0
    %vm1250 = vcmp.gt.s32.totalorder %v1248, 0
    %v1251 = vsel %vm1249, 1, 0
    %v1252 = vsel %vm1250, 1, 0
    %v1253 = vcvt.s32.f32 %v1251
    %v1254 = vcvt.s32.f32 %v1252
    %vm1255 = vcmp.lt.s32.totalorder %v1247, 15
    %vm1256 = vcmp.lt.s32.totalorder %v1248, 15
    %v1257 = vsel %vm1255, 1, 0
    %v1258 = vsel %vm1256, 1, 0
    %v1259 = vcvt.s32.f32 %v1257
    %v1260 = vcvt.s32.f32 %v1258
    %v1261 = vrot.slane %v1242, 7
    %v1262 = vrot.slane %v1243, 7
    %v1263 = vrot.slane %v1244, 7
    %v1264 = vrot.slane %v1245, 7
    %vm1265 = vcmp.lt.s32.totalorder %v1247, 1
    %v1266 = vsel %vm1265, %v1261, %v1263
    %v1267 = vsel %vm1265, %v1262, %v1264
    %v1268 = vsel %vm1265, %v1263, %v1261
    %v1269 = vsel %vm1265, %v1264, %v1262
    %v1270 = vmul.f32 %v1268, %v1253
    %v1271 = vmul.f32 %v1269, %v1253
    %v1272 = vmul.f32 %v1266, %v1254
    %v1273 = vmul.f32 %v1267, %v1254
    %v1274 = vrot.slane %v1242, 1
    %v1275 = vrot.slane %v1243, 1
    %v1276 = vrot.slane %v1244, 1
    %v1277 = vrot.slane %v1245, 1
    %vm1278 = vcmp.lt.s32.totalorder %v1247, 7
    %v1279 = vsel %vm1278, %v1274, %v1276
    %v1280 = vsel %vm1278, %v1275, %v1277
    %v1281 = vsel %vm1278, %v1276, %v1274
    %v1282 = vsel %vm1278, %v1277, %v1275
    %v1283 = vmul.f32 %v1279, %v1259
    %v1284 = vmul.f32 %v1280, %v1259
    %v1285 = vmul.f32 %v1281, %v1260
    %v1286 = vmul.f32 %v1282, %v1260
    %1287 = vrot.lane.b32.xlu0 %v1270, 1
    %v1288 = vpop.permute.xlu0 %1287
    %1289 = vrot.lane.b32.xlu0 %v1272, 1
    %v1290 = vpop.permute.xlu0 %1289
    %1291 = vrot.lane.b32.xlu0 %v1271, 1
    %v1292 = vpop.permute.xlu0 %1291
    %1293 = vrot.lane.b32.xlu0 %v1273, 1
    %v1294 = vpop.permute.xlu0 %1293
    %v1295 = vlaneseq
    %v1296 = vand.u32 %v1295, 127
    %vm1297 = vcmp.lt.s32.totalorder %v1296, 1
    %v1298 = vsel %vm1297, %v1288, %v1292
    %v1299 = vsel %vm1297, %v1290, %v1294
    %v1300 = vsel %vm1297, %v1292, %v1288
    %v1301 = vsel %vm1297, %v1294, %v1290
    %1302 = vrot.lane.b32.xlu0 %v1270, 127
    %v1303 = vpop.permute.xlu0 %1302
    %1304 = vrot.lane.b32.xlu0 %v1272, 127
    %v1305 = vpop.permute.xlu0 %1304
    %1306 = vrot.lane.b32.xlu0 %v1271, 127
    %v1307 = vpop.permute.xlu0 %1306
    %1308 = vrot.lane.b32.xlu0 %v1273, 127
    %v1309 = vpop.permute.xlu0 %1308
    %vm1310 = vcmp.lt.s32.totalorder %v1296, 127
    %v1311 = vsel %vm1310, %v1303, %v1307
    %v1312 = vsel %vm1310, %v1305, %v1309
    %v1313 = vsel %vm1310, %v1307, %v1303
    %v1314 = vsel %vm1310, %v1309, %v1305
    %v1315 = vld [vmem:[#allocation10] ss:$8 sm:$0x3]
    %v1317 = vlaneseq
    %v1318 = vshrl.u32 %v1317, 7
    %v1319 = vsub.s32 0, %v1318
    %v1320 = vrot.slane %v1315, %v1319
    %v1321 = vlaneseq
    %v1322 = vshrl.u32 %v1321, 7
    %v1323 = vsub.s32 1, %v1322
    %v1324 = vrot.slane %v1315, %v1323
    %v1327 = vmul.f32 %v1320, %v1300
    %v1328 = vmul.f32 %v1324, %v1298
    %v1329 = vmul.f32 %v1320, %v1301
    %v1330 = vmul.f32 %v1324, %v1299
    %s1331 = scalar_lea.vmem [#allocation10], 1
    %v1332 = vld [vmem:[%s1331] ss:$8 sm:$0x3]
    %v1334 = vlaneseq
    %v1335 = vshrl.u32 %v1334, 7
    %v1336 = vsub.s32 0, %v1335
    %v1337 = vrot.slane %v1332, %v1336
    %v1338 = vlaneseq
    %v1339 = vshrl.u32 %v1338, 7
    %v1340 = vsub.s32 1, %v1339
    %v1341 = vrot.slane %v1332, %v1340
    %v1344 = vmul.f32 %v1337, %v1270
    %v1345 = vmul.f32 %v1341, %v1271
    %v1346 = vmul.f32 %v1337, %v1272
    %v1347 = vmul.f32 %v1341, %v1273
    %v1348 = vadd.f32 %v1327, %v1344
    %v1349 = vadd.f32 %v1328, %v1345
    %v1350 = vadd.f32 %v1329, %v1346
    %v1351 = vadd.f32 %v1330, %v1347
    %s1352 = scalar_lea.vmem [#allocation10], 2
    %v1353 = vld [vmem:[%s1352] ss:$8 sm:$0x3]
    %v1355 = vlaneseq
    %v1356 = vshrl.u32 %v1355, 7
    %v1357 = vsub.s32 0, %v1356
    %v1358 = vrot.slane %v1353, %v1357
    %v1359 = vlaneseq
    %v1360 = vshrl.u32 %v1359, 7
    %v1361 = vsub.s32 1, %v1360
    %v1362 = vrot.slane %v1353, %v1361
    %v1365 = vmul.f32 %v1358, %v1311
    %v1366 = vmul.f32 %v1362, %v1313
    %v1367 = vmul.f32 %v1358, %v1312
    %v1368 = vmul.f32 %v1362, %v1314
    %v1369 = vadd.f32 %v1348, %v1365
    %v1370 = vadd.f32 %v1349, %v1366
    %v1371 = vadd.f32 %v1350, %v1367
    %v1372 = vadd.f32 %v1351, %v1368
    %1373 = vrot.lane.b32.xlu0 %v1242, 1
    %v1374 = vpop.permute.xlu0 %1373
    %1375 = vrot.lane.b32.xlu0 %v1244, 1
    %v1376 = vpop.permute.xlu0 %1375
    %1377 = vrot.lane.b32.xlu0 %v1243, 1
    %v1378 = vpop.permute.xlu0 %1377
    %1379 = vrot.lane.b32.xlu0 %v1245, 1
    %v1380 = vpop.permute.xlu0 %1379
    %v1381 = vsel %vm1297, %v1374, %v1378
    %v1382 = vsel %vm1297, %v1376, %v1380
    %v1383 = vsel %vm1297, %v1378, %v1374
    %v1384 = vsel %vm1297, %v1380, %v1376
    %1385 = vrot.lane.b32.xlu0 %v1242, 127
    %v1386 = vpop.permute.xlu0 %1385
    %1387 = vrot.lane.b32.xlu0 %v1244, 127
    %v1388 = vpop.permute.xlu0 %1387
    %1389 = vrot.lane.b32.xlu0 %v1243, 127
    %v1390 = vpop.permute.xlu0 %1389
    %1391 = vrot.lane.b32.xlu0 %v1245, 127
    %v1392 = vpop.permute.xlu0 %1391
    %v1393 = vsel %vm1310, %v1386, %v1390
    %v1394 = vsel %vm1310, %v1388, %v1392
    %v1395 = vsel %vm1310, %v1390, %v1386
    %v1396 = vsel %vm1310, %v1392, %v1388
    %s1397 = scalar_lea.vmem [#allocation10], 3
    %v1398 = vld [vmem:[%s1397] ss:$8 sm:$0x3]
    %v1400 = vlaneseq
    %v1401 = vshrl.u32 %v1400, 7
    %v1402 = vsub.s32 0, %v1401
    %v1403 = vrot.slane %v1398, %v1402
    %v1404 = vlaneseq
    %v1405 = vshrl.u32 %v1404, 7
    %v1406 = vsub.s32 1, %v1405
    %v1407 = vrot.slane %v1398, %v1406
    %v1410 = vmul.f32 %v1403, %v1383
    %v1411 = vmul.f32 %v1407, %v1381
    %v1412 = vmul.f32 %v1403, %v1384
    %v1413 = vmul.f32 %v1407, %v1382
    %s1414 = scalar_lea.vmem [#allocation10], 4
    %v1415 = vld [vmem:[%s1414] ss:$8 sm:$0x3]
    %v1417 = vlaneseq
    %v1418 = vshrl.u32 %v1417, 7
    %v1419 = vsub.s32 0, %v1418
    %v1420 = vrot.slane %v1415, %v1419
    %v1421 = vlaneseq
    %v1422 = vshrl.u32 %v1421, 7
    %v1423 = vsub.s32 1, %v1422
    %v1424 = vrot.slane %v1415, %v1423
    %v1427 = vmul.f32 %v1420, %v1242
    %v1428 = vmul.f32 %v1424, %v1243
    %v1429 = vmul.f32 %v1420, %v1244
    %v1430 = vmul.f32 %v1424, %v1245
    %v1431 = vadd.f32 %v1410, %v1427
    %v1432 = vadd.f32 %v1411, %v1428
    %v1433 = vadd.f32 %v1412, %v1429
    %v1434 = vadd.f32 %v1413, %v1430
    %s1435 = scalar_lea.vmem [#allocation10], 5
    %v1436 = vld [vmem:[%s1435] ss:$8 sm:$0x3]
    %v1438 = vlaneseq
    %v1439 = vshrl.u32 %v1438, 7
    %v1440 = vsub.s32 0, %v1439
    %v1441 = vrot.slane %v1436, %v1440
    %v1442 = vlaneseq
    %v1443 = vshrl.u32 %v1442, 7
    %v1444 = vsub.s32 1, %v1443
    %v1445 = vrot.slane %v1436, %v1444
    %v1448 = vmul.f32 %v1441, %v1393
    %v1449 = vmul.f32 %v1445, %v1395
    %v1450 = vmul.f32 %v1441, %v1394
    %v1451 = vmul.f32 %v1445, %v1396
    %v1452 = vadd.f32 %v1431, %v1448
    %v1453 = vadd.f32 %v1432, %v1449
    %v1454 = vadd.f32 %v1433, %v1450
    %v1455 = vadd.f32 %v1434, %v1451
    %v1456 = vadd.f32 %v1369, %v1452
    %v1457 = vadd.f32 %v1370, %v1453
    %v1458 = vadd.f32 %v1371, %v1454
    %v1459 = vadd.f32 %v1372, %v1455
    %1460 = vrot.lane.b32.xlu0 %v1283, 1
    %v1461 = vpop.permute.xlu0 %1460
    %1462 = vrot.lane.b32.xlu0 %v1285, 1
    %v1463 = vpop.permute.xlu0 %1462
    %1464 = vrot.lane.b32.xlu0 %v1284, 1
    %v1465 = vpop.permute.xlu0 %1464
    %1466 = vrot.lane.b32.xlu0 %v1286, 1
    %v1467 = vpop.permute.xlu0 %1466
    %v1468 = vsel %vm1297, %v1461, %v1465
    %v1469 = vsel %vm1297, %v1463, %v1467
    %v1470 = vsel %vm1297, %v1465, %v1461
    %v1471 = vsel %vm1297, %v1467, %v1463
    %1472 = vrot.lane.b32.xlu0 %v1283, 127
    %v1473 = vpop.permute.xlu0 %1472
    %1474 = vrot.lane.b32.xlu0 %v1285, 127
    %v1475 = vpop.permute.xlu0 %1474
    %1476 = vrot.lane.b32.xlu0 %v1284, 127
    %v1477 = vpop.permute.xlu0 %1476
    %1478 = vrot.lane.b32.xlu0 %v1286, 127
    %v1479 = vpop.permute.xlu0 %1478
    %v1480 = vsel %vm1310, %v1473, %v1477
    %v1481 = vsel %vm1310, %v1475, %v1479
    %v1482 = vsel %vm1310, %v1477, %v1473
    %v1483 = vsel %vm1310, %v1479, %v1475
    %s1484 = scalar_lea.vmem [#allocation10], 6
    %v1485 = vld [vmem:[%s1484] ss:$8 sm:$0x3]
    %v1487 = vlaneseq
    %v1488 = vshrl.u32 %v1487, 7
    %v1489 = vsub.s32 0, %v1488
    %v1490 = vrot.slane %v1485, %v1489
    %v1491 = vlaneseq
    %v1492 = vshrl.u32 %v1491, 7
    %v1493 = vsub.s32 1, %v1492
    %v1494 = vrot.slane %v1485, %v1493
    %v1497 = vmul.f32 %v1490, %v1470
    %v1498 = vmul.f32 %v1494, %v1468
    %v1499 = vmul.f32 %v1490, %v1471
    %v1500 = vmul.f32 %v1494, %v1469
    %s1501 = scalar_lea.vmem [#allocation10], 7
    %v1502 = vld [vmem:[%s1501] ss:$8 sm:$0x3]
    %v1504 = vlaneseq
    %v1505 = vshrl.u32 %v1504, 7
    %v1506 = vsub.s32 0, %v1505
    %v1507 = vrot.slane %v1502, %v1506
    %v1508 = vlaneseq
    %v1509 = vshrl.u32 %v1508, 7
    %v1510 = vsub.s32 1, %v1509
    %v1511 = vrot.slane %v1502, %v1510
    %v1514 = vmul.f32 %v1507, %v1283
    %v1515 = vmul.f32 %v1511, %v1284
    %v1516 = vmul.f32 %v1507, %v1285
    %v1517 = vmul.f32 %v1511, %v1286
    %v1518 = vadd.f32 %v1497, %v1514
    %v1519 = vadd.f32 %v1498, %v1515
    %v1520 = vadd.f32 %v1499, %v1516
    %v1521 = vadd.f32 %v1500, %v1517
    %s1522 = scalar_lea.vmem [#allocation10], 16
    %v1523 = vld [vmem:[%s1522] ss:$8 sm:$0x3]
    %v1525 = vlaneseq
    %v1526 = vshrl.u32 %v1525, 7
    %v1527 = vsub.s32 0, %v1526
    %v1528 = vrot.slane %v1523, %v1527
    %v1529 = vlaneseq
    %v1530 = vshrl.u32 %v1529, 7
    %v1531 = vsub.s32 1, %v1530
    %v1532 = vrot.slane %v1523, %v1531
    %v1535 = vmul.f32 %v1528, %v1480
    %v1536 = vmul.f32 %v1532, %v1482
    %v1537 = vmul.f32 %v1528, %v1481
    %v1538 = vmul.f32 %v1532, %v1483
    %v1539 = vadd.f32 %v1518, %v1535
    %v1540 = vadd.f32 %v1519, %v1536
    %v1541 = vadd.f32 %v1520, %v1537
    %v1542 = vadd.f32 %v1521, %v1538
    %v1543 = vadd.f32 %v1456, %v1539
    %v1544 = vadd.f32 %v1457, %v1540
    %v1545 = vadd.f32 %v1458, %v1541
    %v1546 = vadd.f32 %v1459, %v1542
    %v1547 = vld [vmem:[%s11] sm:$0x3]
    %v1549 = vlaneseq
    %v1550 = vshrl.u32 %v1549, 7
    %v1551 = vsub.s32 0, %v1550
    %v1552 = vrot.slane %v1547, %v1551
    %v1553 = vlaneseq
    %v1554 = vshrl.u32 %v1553, 7
    %v1555 = vsub.s32 1, %v1554
    %v1556 = vrot.slane %v1547, %v1555
    %v1559 = vadd.f32 %v1543, %v1552
    %v1560 = vadd.f32 %v1544, %v1556
    %v1561 = vadd.f32 %v1545, %v1552
    %v1562 = vadd.f32 %v1546, %v1556
    %v1563 = vpack.c.bf16 %v1561, %v1559
    %v1564 = vpack.c.bf16 %v1562, %v1560
    %1565 = vmatprep.subr.bf16.mxu0 0
    %1566 = vmatpush1.bf16.msra.mxu0 %v920
    %1567 = vmatprep.subr.bf16.mxu0 0
    %1568 = vmatpush1.bf16.msra.mxu0 %v921
    %1569 = vmatprep.subr.bf16.mxu0 0
    %1570 = vmatpush1.bf16.msra.mxu0 %v922
    %1571 = vmatprep.subr.bf16.mxu0 0
    %1572 = vmatpush1.bf16.msra.mxu0 %v923
    %1573 = vmatprep.subr.bf16.mxu0 0
    %1574 = vmatpush1.bf16.msra.mxu0 %v924
    %1575 = vmatprep.subr.bf16.mxu0 0
    %1576 = vmatpush1.bf16.msra.mxu0 %v925
    %1577 = vmatprep.subr.bf16.mxu0 0
    %1578 = vmatpush1.bf16.msra.mxu0 %v926
    %1579 = vmatprep.subr.bf16.mxu0 0
    %1580 = vmatpush1.bf16.msra.mxu0 %v927
    %1581 = vmatprep.subr.bf16.mxu0 0
    %1582 = vmatpush1.bf16.msra.mxu0 %v928
    %1583 = vmatprep.subr.bf16.mxu0 0
    %1584 = vmatpush1.bf16.msra.mxu0 %v929
    %1585 = vmatprep.subr.bf16.mxu0 0
    %1586 = vmatpush1.bf16.msra.mxu0 %v930
    %1587 = vmatprep.subr.bf16.mxu0 0
    %1588 = vmatpush1.bf16.msra.mxu0 %v931
    %1589 = vmatprep.subr.bf16.mxu0 0
    %1590 = vmatpush1.bf16.msra.mxu0 %v932
    %1591 = vmatprep.subr.bf16.mxu0 0
    %1592 = vmatpush1.bf16.msra.mxu0 %v933
    %1593 = vmatprep.subr.bf16.mxu0 0
    %1594 = vmatpush1.bf16.msra.mxu0 %v934
    %1595 = vmatprep.subr.bf16.mxu0 0
    %1596 = vmatpush1.bf16.msra.mxu0 %v935
    %1597 = vmatprep.mubr.bf16.mxu0 %v1564
    %1598 = vmatmul.mubr.bf16.gmra.mrb[0].mxu0 %v1563
    %v1599 = vpop.f32.mrb[0].mxu0
    %v1600 = vadd.f32 0.0, %v1599
    %v1601 = vpop.f32.mrb[0].mxu0
    %v1602 = vpop.f32.mrb[0].mxu0
    %v1603 = vadd.f32 0.0, %v1602
    %v1604 = vpop.f32.mrb[0].mxu0
    %1605 = vdwg.mxu0
    %v1606 = vpack.c.bf16 %v1603, %v1600
    %v1607 = vld [vmem:[#allocation8] sm:$0xf]
    %v1608 = vld [vmem:[#allocation8 + $0x4] sm:$0xf]
    %v1609 = vld [vmem:[#allocation8 + $0x8] sm:$0xf]
    %v1610 = vld [vmem:[#allocation8 + $0xc] sm:$0xf]
    %v1611 = vld [vmem:[#allocation8 + $0x10] sm:$0xf]
    %v1612 = vld [vmem:[#allocation8 + $0x14] sm:$0xf]
    %v1613 = vld [vmem:[#allocation8 + $0x18] sm:$0xf]
    %v1614 = vld [vmem:[#allocation8 + $0x1c] sm:$0xf]
    %v1615 = vld [vmem:[%s12] sm:$0x1]
    %v1617 = vlaneseq
    %v1618 = vshrl.u32 %v1617, 7
    %v1619 = vsub.s32 0, %v1618
    %v1620 = vrot.slane %v1615, %v1619
    %v1630 = vunpack.c.l.b16 %v1607
    %v1631 = vunpack.c.l.b16 %v1608
    %v1632 = vunpack.c.l.b16 %v1609
    %v1633 = vunpack.c.l.b16 %v1610
    %v1634 = vunpack.c.l.b16 %v1611
    %v1635 = vunpack.c.l.b16 %v1612
    %v1636 = vunpack.c.l.b16 %v1613
    %v1637 = vunpack.c.l.b16 %v1614
    %v1638 = vpack.c.b16 %v1631, %v1630
    %v1639 = vpack.c.b16 %v1633, %v1632
    %v1640 = vpack.c.b16 %v1635, %v1634
    %v1641 = vpack.c.b16 %v1637, %v1636
    %v1647 = vsel %vm153, %v1606, 0
    %1649 = vmatprep.subr.bf16.mxu0 0
    %1650 = vmatpush1.bf16.msra.mxu0 %v1638
    %1651 = vmatprep.subr.bf16.mxu0 0
    %1652 = vmatpush1.bf16.msra.mxu0 %v1639
    %1653 = vmatprep.subr.bf16.mxu0 0
    %1654 = vmatpush1.bf16.msra.mxu0 %v1640
    %1655 = vmatprep.subr.bf16.mxu0 0
    %1656 = vmatpush1.bf16.msra.mxu0 %v1641
    %1657 = vmatprep.subr.bf16.mxu0 0
    %1658 = vmatpush1.bf16.msra.mxu0 0
    %1659 = vmatprep.subr.bf16.mxu0 0
    %1660 = vmatpush1.bf16.msra.mxu0 0
    %1661 = vmatprep.subr.bf16.mxu0 0
    %1662 = vmatpush1.bf16.msra.mxu0 0
    %1663 = vmatprep.subr.bf16.mxu0 0
    %1664 = vmatpush1.bf16.msra.mxu0 0
    %1665 = vmatprep.subr.bf16.mxu0 0
    %1666 = vmatpush1.bf16.msra.mxu0 0
    %1667 = vmatprep.subr.bf16.mxu0 0
    %1668 = vmatpush1.bf16.msra.mxu0 0
    %1669 = vmatprep.subr.bf16.mxu0 0
    %1670 = vmatpush1.bf16.msra.mxu0 0
    %1671 = vmatprep.subr.bf16.mxu0 0
    %1672 = vmatpush1.bf16.msra.mxu0 0
    %1673 = vmatprep.subr.bf16.mxu0 0
    %1674 = vmatpush1.bf16.msra.mxu0 0
    %1675 = vmatprep.subr.bf16.mxu0 0
    %1676 = vmatpush1.bf16.msra.mxu0 0
    %1677 = vmatprep.subr.bf16.mxu0 0
    %1678 = vmatpush1.bf16.msra.mxu0 0
    %1679 = vmatprep.subr.bf16.mxu0 0
    %1680 = vmatpush1.bf16.msra.mxu0 0
    %1681 = vmatprep.mubr.bf16.mxu0 0
    %1682 = vmatmul.mubr.bf16.gmra.mrb[0].mxu0 %v1647
    %v1683 = vpop.f32.mrb[0].mxu0
    %v1684 = vadd.f32 %v1620, %v1683
    %v1685 = vpop.f32.mrb[0].mxu0
    %v1686 = vpop.f32.mrb[0].mxu0
    %v1687 = vadd.f32 %v1620, %v1686
    %v1688 = vpop.f32.mrb[0].mxu0
    %1689 = vdwg.mxu0
    %1690 = vst.msk [vmem:[#allocation11] sm:$0xff] %vm153, %v1684
    %1691 = vst.msk [vmem:[#allocation11 + $0x8] sm:$0xff] %vm153, %v1687
    // Predicated region
    $region74: #{tpu_custom_call.1} parent=1 // pred_check
      _
    $region75: #{tpu_custom_call.1} parent=1 // pred_check_branch
      %1693 = sbr.rel (0) target = $region77
    $region76: #{tpu_custom_call.1} parent=1 // pred_region
      %s1695 = ssub.s32 256, 256
      %1696 = vsyncadd [#allocation4], %s1695
      %s1697 = sshll.u32 [#allocation11], 4
      %s1698 = int_to_ptr.vmem [resolvable:$true] %s1697
      %1703 = dma.vmem_to_hbm [thread:$0]  %s1698, 256, %s13, [#allocation4], 128, 128, 8
    $region77: #{tpu_custom_call.1} parent=1 // pred_fallthru
      _
    // Predicated region
    $region78: #{tpu_custom_call.1} parent=1 // pred_check
      _
    $region79: #{tpu_custom_call.1} parent=1 // pred_check_branch
      %1705 = sbr.rel (0) target = $region81
    $region80: #{tpu_custom_call.1} parent=1 // pred_region
      %1706 = dma.done [#allocation4], 256
    $region81: #{tpu_custom_call.1} parent=1 // pred_fallthru
      _
    %1707 = vsyncpa [#allocation3], 1
    %1708 = vsyncpa [#allocation6], 1
    %1709 = vsyncpa [#allocation9], 1
    %1710 = vsyncpa [#allocation4], 1

</llo_original>
